<compile_context>
chip_gen: v6e
topology: v6e:2x2x1
jax: 0.10.0
libtpu: 0.0.40
codegen_flags: <defaults>
</compile_context>

<pallas_src>
import functools
from math import sqrt

import jax
import jax.numpy as jnp
from jax.experimental import pallas as pl
from jax.experimental.pallas import tpu as pltpu


def mha_kernel(q_in_ref, k_in_ref, v_in_ref, mat_ref, mask_ref,
               wq_ref, wk_ref, wv_ref, wfc_ref, ln_g_ref, ln_b_ref,
               out_ref, *, n_heads, d_k, d_v, matmul_dtype):
    """MultiHeadAttention forward for one block of `bb` batch elements.

    Kernel-side shapes (bb = batch elements handled by this grid step):
      q_in/k_in/v_in : (bb, S, D)   f32
      mat            : (H, bb, S, S) f32, head-major multiplicative weighting
      mask           : (1, bb, S)   int32, 1 = real token, 0 = pad
      wq/wk          : (H, D, d_k)  bf16 (1/sqrt(d_k) already folded into wq)
      wv             : (H, D, d_v)  bf16
      wfc            : (H, d_v, D)  bf16
      out            : (bb, S, D)   f32
    """
    H, DK, DV = n_heads, d_k, d_v
    bb, S, D = q_in_ref.shape
    R = bb * S                       # rows per projection matmul
    G = H * bb                       # batch dim of the per-head attention contractions
    mdt = matmul_dtype

    def as_rows(ref):                # (bb, S, D) -> (R, D) in matmul dtype
        return ref[...].reshape(R, D).astype(mdt)

    xq, xk, xv = as_rows(q_in_ref), as_rows(k_in_ref), as_rows(v_in_ref)

    # --- head-batched projections: Q/K/V produced head-major straight off the MXU. ---
    # Broadcasting the activations over the head axis is a cheap vreg replication and
    # turns each projection into one batched dot_general (no output transpose).
    xq_h = jnp.broadcast_to(xq[None], (H, R, D))
    xk_h = jnp.broadcast_to(xk[None], (H, R, D))
    xv_h = jnp.broadcast_to(xv[None], (H, R, D))

    q3 = jnp.einsum('hrd,hdk->hrk', xq_h, wq_ref[...],
                    preferred_element_type=jnp.float32)            # (H, R, DK)
    k3 = jnp.einsum('hrd,hdk->hrk', xk_h, wk_ref[...],
                    preferred_element_type=jnp.float32)            # (H, R, DK)
    v3 = jnp.einsum('hrd,hdk->hrk', xv_h, wv_ref[...],
                    preferred_element_type=jnp.float32)            # (H, R, DV)

    # (H, bb*S, d) -> (G, S, d): leading/sublane reshape only (same element order).
    q3 = q3.reshape(G, S, DK).astype(mdt)
    k3 = k3.reshape(G, S, DK).astype(mdt)
    v3 = v3.reshape(G, S, DV).astype(mdt)

    # --- scores for every (head, batch) pair in one batched contraction. -------------
    # (K transpose folded into dot_general dimension numbers; 1/sqrt(d_k) already in Q.)
    scores = jnp.einsum('gqd,gkd->gqk', q3, k3,
                        preferred_element_type=jnp.float32)        # (G, S, S) f32
    scores = scores.reshape(H, bb, S, S) * mat_ref[...]            # multiplicative matrix

    # masked_fill_(attn_mask, -1e9): padded keys set to exactly -1e9 (broadcast over
    # heads and queries), matching the PyTorch reference.
    key_is_pad = (mask_ref[0] == 0)                                # (bb, S) bool
    scores = jnp.where(key_is_pad[None, :, None, :], -1000000000.0, scores)

    # --- softmax (f32; denominator on the EUP reciprocal slot). ----------------------
    scores = scores - jnp.max(scores, axis=-1, keepdims=True)
    e = jnp.exp(scores)
    attn = e * pl.reciprocal(jnp.sum(e, axis=-1, keepdims=True), approx=True)
    # TODO(synk): attention dropout (nn.Dropout) not implemented; identity in eval mode.

    # --- context = attn @ V, one batched contraction. --------------------------------
    ctx = jnp.einsum('gqk,gkd->gqd', attn.reshape(G, S, S).astype(mdt), v3,
                     preferred_element_type=jnp.float32)           # (G, S, DV)

    # --- output projection: fc(concat_h ctx_h) == sum_h ctx_h @ Wfc_h. ---------------
    # Head-batched matmul + head sum; avoids any lane-axis concatenation.
    outh = jnp.einsum('hxd,hdm->hxm', ctx.reshape(H, R, DV).astype(mdt), wfc_ref[...],
                      preferred_element_type=jnp.float32)          # (H, R, D)
    out = jnp.sum(outh, axis=0)                                    # (R, D) f32

    # --- LayerNorm (f32, rsqrt on the EUP), matching nn.LayerNorm (eps=1e-5). --------
    mu = jnp.mean(out, axis=-1, keepdims=True)
    var = jnp.mean((out - mu) ** 2, axis=-1, keepdims=True)
    out = (out - mu) * jax.lax.rsqrt(var + 1e-5) * ln_g_ref[0] + ln_b_ref[0]
    # TODO(synk): output dropout (nn.Dropout) not implemented; identity in eval mode.

    # --- writeback: plain (bb, S, D) store (leading/sublane reshape only). -----------
    out_ref[...] = out.reshape(bb, S, D).astype(out_ref.dtype)


def prepare_params(params, *, n_heads, d_k, d_v, matmul_dtype=jnp.bfloat16):
    """One-time parameter re-layout (do NOT call per forward step).

    Converts nn.Linear-style (in, out) weights to head-major bf16 layouts, folds the
    1/sqrt(d_k) scale into W_Q, and reshapes fc to (H, d_v, D) so the kernel never
    touches weight layout or casting.
    """
    D = params["wq"].shape[0]
    wq = (params["wq"] * (1.0 / sqrt(d_k))).reshape(D, n_heads, d_k).transpose(1, 0, 2)
    wk = params["wk"].reshape(D, n_heads, d_k).transpose(1, 0, 2)
    wv = params["wv"].reshape(D, n_heads, d_v).transpose(1, 0, 2)
    wfc = params["wfc"].reshape(n_heads, d_v, D)
    return {
        "wq_h": wq.astype(matmul_dtype),        # (H, D, d_k), pre-scaled
        "wk_h": wk.astype(matmul_dtype),        # (H, D, d_k)
        "wv_h": wv.astype(matmul_dtype),        # (H, D, d_v)
        "wfc_h": wfc.astype(matmul_dtype),      # (H, d_v, D)
        "ln_g": params["ln_g"].astype(jnp.float32),   # (1, D)
        "ln_b": params["ln_b"].astype(jnp.float32),   # (1, D)
    }


def multi_head_attention(input_q, input_k, input_v, key_mask, matrix, prepped,
                         *, n_heads, d_k, d_v, batch_block=None,
                         matmul_dtype=jnp.bfloat16):
    """Pallas forward of MultiHeadAttention.

    key_mask: (B, S) with 1 = valid token, 0 = padding (equivalent to the PyTorch
    key-padding attn_mask broadcast over queries).
    prepped:  output of prepare_params() (head-major bf16 weights).

    batch_block: batch elements per grid step.  Default = whole batch (single grid
    step; best on single-TensorCore v5e/v6e).  On v7x pass batch_block = B // 2 so the
    "parallel" grid axis feeds both TensorCores; for much larger S also tile the head
    axis of `matrix` and/or raise vmem_limit_bytes for the 64 MiB VMEM budget.
    """
    B, S, D = input_q.shape
    H = n_heads
    bb = B if batch_block is None else batch_block
    assert B % bb == 0, "batch_block must divide the batch size"
    nb = B // bb

    # Wrapper-side (cheap, plain XLA) re-layouts: head-major matrix, compact int mask.
    mat_hmajor = jnp.transpose(matrix, (1, 0, 2, 3))          # (H, B, S, S)
    mask_i = key_mask.astype(jnp.int32).reshape(nb, bb, S)    # (nb, bb, S)

    kernel = functools.partial(mha_kernel, n_heads=H, d_k=d_k, d_v=d_v,
                               matmul_dtype=matmul_dtype)

    out = pl.pallas_call(
        kernel,
        out_shape=jax.ShapeDtypeStruct((B, S, D), jnp.float32),
        grid_spec=pltpu.PrefetchScalarGridSpec(
            num_scalar_prefetch=0,
            grid=(nb,),
            in_specs=[
                pl.BlockSpec((bb, S, D), lambda i: (i, 0, 0)),          # input_Q
                pl.BlockSpec((bb, S, D), lambda i: (i, 0, 0)),          # input_K
                pl.BlockSpec((bb, S, D), lambda i: (i, 0, 0)),          # input_V
                pl.BlockSpec((H, bb, S, S), lambda i: (0, i, 0, 0)),    # matrix (head-major)
                pl.BlockSpec((1, bb, S), lambda i: (i, 0, 0)),          # key padding mask
                pl.BlockSpec((H, D, d_k), lambda i: (0, 0, 0)),         # W_Q (head-major, scaled)
                pl.BlockSpec((H, D, d_k), lambda i: (0, 0, 0)),         # W_K (head-major)
                pl.BlockSpec((H, D, d_v), lambda i: (0, 0, 0)),         # W_V (head-major)
                pl.BlockSpec((H, d_v, D), lambda i: (0, 0, 0)),         # fc  (head-major)
                pl.BlockSpec((1, D), lambda i: (0, 0)),                 # LayerNorm gamma
                pl.BlockSpec((1, D), lambda i: (0, 0)),                 # LayerNorm beta
            ],
            out_specs=pl.BlockSpec((bb, S, D), lambda i: (i, 0, 0)),
        ),
        compiler_params=pltpu.CompilerParams(dimension_semantics=("parallel",)),
    )(input_q, input_k, input_v, mat_hmajor, mask_i,
      prepped["wq_h"], prepped["wk_h"], prepped["wv_h"], prepped["wfc_h"],
      prepped["ln_g"], prepped["ln_b"])

    return out


def init_params(key, d_model, d_k, d_v, n_heads):
    """nn.Linear-style weights, stored transposed (in, out) so forward is x @ W."""
    k1, k2, k3, k4 = jax.random.split(key, 4)
    s = 1.0 / sqrt(d_model)
    return {
        "wq": jax.random.normal(k1, (d_model, n_heads * d_k), jnp.float32) * s,
        "wk": jax.random.normal(k2, (d_model, n_heads * d_k), jnp.float32) * s,
        "wv": jax.random.normal(k3, (d_model, n_heads * d_v), jnp.float32) * s,
        "wfc": jax.random.normal(k4, (n_heads * d_v, d_model), jnp.float32) * s,
        "ln_g": jnp.ones((1, d_model), jnp.float32),
        "ln_b": jnp.zeros((1, d_model), jnp.float32),
    }


def mha_reference(x_q, x_k, x_v, key_mask, matrix, params, *, n_heads, d_k, d_v):
    """Pure-JAX f32 mirror of the PyTorch forward (eval mode)."""
    B, S, D = x_q.shape
    q = (x_q @ params["wq"]).reshape(B, S, n_heads, d_k).transpose(0, 2, 1, 3)
    k = (x_k @ params["wk"]).reshape(B, S, n_heads, d_k).transpose(0, 2, 1, 3)
    v = (x_v @ params["wv"]).reshape(B, S, n_heads, d_v).transpose(0, 2, 1, 3)
    scores = jnp.einsum('bhqd,bhkd->bhqk', q, k, precision='highest') / sqrt(d_k)
    scores = scores * matrix
    pad = (key_mask == 0)[:, None, None, :]                 # (B,1,1,S) True = pad key
    scores = jnp.where(pad, -1000000000.0, scores)
    attn = jax.nn.softmax(scores, axis=-1)
    ctx = jnp.einsum('bhqk,bhkd->bhqd', attn, v, precision='highest')
    ctx = ctx.transpose(0, 2, 1, 3).reshape(B, S, n_heads * d_v)
    out = ctx @ params["wfc"]
    mu = out.mean(-1, keepdims=True)
    var = ((out - mu) ** 2).mean(-1, keepdims=True)
    return (out - mu) * jax.lax.rsqrt(var + 1e-5) * params["ln_g"][0] + params["ln_b"][0]


if __name__ == "__main__":
    # Small config consistent with TransFoxMol: d_model=32, d_k=d_v=8, n_heads=4.
    B, S, D = 2, 8, 32
    H, DK, DV = 4, 8, 8

    key = jax.random.PRNGKey(0)
    kx, km, kp = jax.random.split(key, 3)

    x = jax.random.normal(kx, (B, S, D), jnp.float32)   # input_Q = input_K = input_V
    # 1 = valid token, 0 = pad (second sample has 3 padded positions).
    key_mask = jnp.array([[1, 1, 1, 1, 1, 1, 1, 1],
                          [1, 1, 1, 1, 1, 0, 0, 0]], dtype=jnp.float32)
    # Per-head multiplicative attention "matrix" (e.g. molecular adjacency weighting).
    matrix = jax.random.uniform(km, (B, H, S, S), jnp.float32)

    params = init_params(kp, D, DK, DV, H)
    prepped = prepare_params(params, n_heads=H, d_k=DK, d_v=DV)

    out = multi_head_attention(x, x, x, key_mask, matrix, prepped,
                               n_heads=H, d_k=DK, d_v=DV)
    jax.block_until_ready(out)
    assert out.shape == (B, S, D)
    assert bool(jnp.all(jnp.isfinite(out)))

    # Loose tolerance: kernel uses bf16 matmul operands + approx EUP reciprocal,
    # reference is f32 (use approx=False / f32 matmuls for tight parity tests).
    ref = mha_reference(x, x, x, key_mask, matrix, params, n_heads=H, d_k=DK, d_v=DV)
    max_diff = float(jnp.max(jnp.abs(out - ref)))
    assert max_diff < 0.2, f"kernel deviates from reference: max|diff|={max_diff}"

    print("KERNEL_OK")
</pallas_src>

<mosaic_0001>
module attributes {stable_mosaic.version = 11 : i64} {
  func.func @mha_kernel(%arg0: i32, %arg1: memref<2x8x32xf32, #tpu.memory_space<vmem>>, %arg2: memref<2x8x32xf32, #tpu.memory_space<vmem>>, %arg3: memref<2x8x32xf32, #tpu.memory_space<vmem>>, %arg4: memref<4x2x8x8xf32, #tpu.memory_space<vmem>>, %arg5: memref<1x2x8xi32, #tpu.memory_space<vmem>>, %arg6: memref<4x32x8xbf16, #tpu.memory_space<vmem>>, %arg7: memref<4x32x8xbf16, #tpu.memory_space<vmem>>, %arg8: memref<4x32x8xbf16, #tpu.memory_space<vmem>>, %arg9: memref<4x8x32xbf16, #tpu.memory_space<vmem>>, %arg10: memref<1x32xf32, #tpu.memory_space<vmem>>, %arg11: memref<1x32xf32, #tpu.memory_space<vmem>>, %arg12: memref<2x8x32xf32, #tpu.memory_space<vmem>>) attributes {dimension_semantics = [#tpu.dimension_semantics<parallel>], iteration_bounds = array<i64: 1>, scalar_prefetch = 0 : i64, scratch_operands = 0 : i64, tpu.core_type = #tpu.core_type<tc>, window_params = [{transform_indices = @transform_0, window_bounds = array<i64: 2, 8, 32>}, {transform_indices = @transform_1, window_bounds = array<i64: 2, 8, 32>}, {transform_indices = @transform_2, window_bounds = array<i64: 2, 8, 32>}, {transform_indices = @transform_3, window_bounds = array<i64: 4, 2, 8, 8>}, {transform_indices = @transform_4, window_bounds = array<i64: 1, 2, 8>}, {pipeline_mode = #tpu.pipeline_mode<synchronous>, transform_indices = @transform_5, window_bounds = array<i64: 4, 32, 8>}, {pipeline_mode = #tpu.pipeline_mode<synchronous>, transform_indices = @transform_6, window_bounds = array<i64: 4, 32, 8>}, {pipeline_mode = #tpu.pipeline_mode<synchronous>, transform_indices = @transform_7, window_bounds = array<i64: 4, 32, 8>}, {pipeline_mode = #tpu.pipeline_mode<synchronous>, transform_indices = @transform_8, window_bounds = array<i64: 4, 8, 32>}, {pipeline_mode = #tpu.pipeline_mode<synchronous>, transform_indices = @transform_9, window_bounds = array<i64: 1, 32>}, {pipeline_mode = #tpu.pipeline_mode<synchronous>, transform_indices = @transform_10, window_bounds = array<i64: 1, 32>}, {transform_indices = @transform_11, window_bounds = array<i64: 2, 8, 32>}]} {
    %c0 = arith.constant 0 : index
    %c0_0 = arith.constant 0 : index
    %c0_1 = arith.constant 0 : index
    %0 = vector.load %arg1[%c0, %c0_0, %c0_1] : memref<2x8x32xf32, #tpu.memory_space<vmem>>, vector<2x8x32xf32>
    %1 = vector.shape_cast %0 : vector<2x8x32xf32> to vector<16x32xf32>
    %2 = arith.truncf %1 : vector<16x32xf32> to vector<16x32xbf16>
    %c0_2 = arith.constant 0 : index
    %c0_3 = arith.constant 0 : index
    %c0_4 = arith.constant 0 : index
    %3 = vector.load %arg2[%c0_2, %c0_3, %c0_4] : memref<2x8x32xf32, #tpu.memory_space<vmem>>, vector<2x8x32xf32>
    %4 = vector.shape_cast %3 : vector<2x8x32xf32> to vector<16x32xf32>
    %5 = arith.truncf %4 : vector<16x32xf32> to vector<16x32xbf16>
    %c0_5 = arith.constant 0 : index
    %c0_6 = arith.constant 0 : index
    %c0_7 = arith.constant 0 : index
    %6 = vector.load %arg3[%c0_5, %c0_6, %c0_7] : memref<2x8x32xf32, #tpu.memory_space<vmem>>, vector<2x8x32xf32>
    %7 = vector.shape_cast %6 : vector<2x8x32xf32> to vector<16x32xf32>
    %8 = arith.truncf %7 : vector<16x32xf32> to vector<16x32xbf16>
    %9 = vector.shape_cast %2 : vector<16x32xbf16> to vector<1x16x32xbf16>
    %10 = vector.shape_cast %9 : vector<1x16x32xbf16> to vector<1x16x32xbf16>
    %11 = vector.broadcast %10 : vector<1x16x32xbf16> to vector<4x16x32xbf16>
    %12 = vector.shape_cast %5 : vector<16x32xbf16> to vector<1x16x32xbf16>
    %13 = vector.shape_cast %12 : vector<1x16x32xbf16> to vector<1x16x32xbf16>
    %14 = vector.broadcast %13 : vector<1x16x32xbf16> to vector<4x16x32xbf16>
    %15 = vector.shape_cast %8 : vector<16x32xbf16> to vector<1x16x32xbf16>
    %16 = vector.shape_cast %15 : vector<1x16x32xbf16> to vector<1x16x32xbf16>
    %17 = vector.broadcast %16 : vector<1x16x32xbf16> to vector<4x16x32xbf16>
    %c0_8 = arith.constant 0 : index
    %c0_9 = arith.constant 0 : index
    %c0_10 = arith.constant 0 : index
    %18 = vector.load %arg6[%c0_8, %c0_9, %c0_10] : memref<4x32x8xbf16, #tpu.memory_space<vmem>>, vector<4x32x8xbf16>
    "tpu.trace_start"() <{level = 10 : i32, message = "hrd,hdk->hrk"}> : () -> ()
    %cst = arith.constant dense<0.000000e+00> : vector<4x16x8xf32>
    %19 = tpu.matmul %11, %18, %cst {dimension_numbers = #tpu.dot_dimension_numbers<[2], [1], [1], [2], [0, 0, 0, 1, 1, 2], [0], [0]>} : vector<4x16x32xbf16>, vector<4x32x8xbf16>, vector<4x16x8xf32> -> vector<4x16x8xf32>
    "tpu.trace_stop"() : () -> ()
    %c0_11 = arith.constant 0 : index
    %c0_12 = arith.constant 0 : index
    %c0_13 = arith.constant 0 : index
    %20 = vector.load %arg7[%c0_11, %c0_12, %c0_13] : memref<4x32x8xbf16, #tpu.memory_space<vmem>>, vector<4x32x8xbf16>
    "tpu.trace_start"() <{level = 10 : i32, message = "hrd,hdk->hrk"}> : () -> ()
    %cst_14 = arith.constant dense<0.000000e+00> : vector<4x16x8xf32>
    %21 = tpu.matmul %14, %20, %cst_14 {dimension_numbers = #tpu.dot_dimension_numbers<[2], [1], [1], [2], [0, 0, 0, 1, 1, 2], [0], [0]>} : vector<4x16x32xbf16>, vector<4x32x8xbf16>, vector<4x16x8xf32> -> vector<4x16x8xf32>
    "tpu.trace_stop"() : () -> ()
    %c0_15 = arith.constant 0 : index
    %c0_16 = arith.constant 0 : index
    %c0_17 = arith.constant 0 : index
    %22 = vector.load %arg8[%c0_15, %c0_16, %c0_17] : memref<4x32x8xbf16, #tpu.memory_space<vmem>>, vector<4x32x8xbf16>
    "tpu.trace_start"() <{level = 10 : i32, message = "hrd,hdk->hrk"}> : () -> ()
    %cst_18 = arith.constant dense<0.000000e+00> : vector<4x16x8xf32>
    %23 = tpu.matmul %17, %22, %cst_18 {dimension_numbers = #tpu.dot_dimension_numbers<[2], [1], [1], [2], [0, 0, 0, 1, 1, 2], [0], [0]>} : vector<4x16x32xbf16>, vector<4x32x8xbf16>, vector<4x16x8xf32> -> vector<4x16x8xf32>
    "tpu.trace_stop"() : () -> ()
    %24 = vector.shape_cast %19 : vector<4x16x8xf32> to vector<8x8x8xf32>
    %25 = arith.truncf %24 : vector<8x8x8xf32> to vector<8x8x8xbf16>
    %26 = vector.shape_cast %21 : vector<4x16x8xf32> to vector<8x8x8xf32>
    %27 = arith.truncf %26 : vector<8x8x8xf32> to vector<8x8x8xbf16>
    %28 = vector.shape_cast %23 : vector<4x16x8xf32> to vector<8x8x8xf32>
    %29 = arith.truncf %28 : vector<8x8x8xf32> to vector<8x8x8xbf16>
    "tpu.trace_start"() <{level = 10 : i32, message = "gqd,gkd->gqk"}> : () -> ()
    %cst_19 = arith.constant dense<0.000000e+00> : vector<8x8x8xf32>
    %30 = tpu.matmul %25, %27, %cst_19 {dimension_numbers = #tpu.dot_dimension_numbers<[2], [2], [1], [1], [0, 0, 0, 1, 1, 1], [0], [0]>} : vector<8x8x8xbf16>, vector<8x8x8xbf16>, vector<8x8x8xf32> -> vector<8x8x8xf32>
    "tpu.trace_stop"() : () -> ()
    %31 = vector.shape_cast %30 : vector<8x8x8xf32> to vector<4x2x8x8xf32>
    %c0_20 = arith.constant 0 : index
    %c0_21 = arith.constant 0 : index
    %c0_22 = arith.constant 0 : index
    %c0_23 = arith.constant 0 : index
    %32 = vector.load %arg4[%c0_20, %c0_21, %c0_22, %c0_23] : memref<4x2x8x8xf32, #tpu.memory_space<vmem>>, vector<4x2x8x8xf32>
    %33 = arith.mulf %31, %32 : vector<4x2x8x8xf32>
    %c0_24 = arith.constant 0 : index
    %c0_25 = arith.constant 0 : index
    %c0_26 = arith.constant 0 : index
    %34 = vector.load %arg5[%c0_24, %c0_25, %c0_26] : memref<1x2x8xi32, #tpu.memory_space<vmem>>, vector<1x2x8xi32>
    %35 = vector.shape_cast %34 : vector<1x2x8xi32> to vector<2x8xi32>
    %c0_i32 = arith.constant 0 : i32
    %36 = vector.broadcast %c0_i32 : i32 to vector<2x8xi32>
    %37 = arith.cmpi eq, %35, %36 : vector<2x8xi32>
    %38 = vector.shape_cast %37 : vector<2x8xi1> to vector<1x2x1x8xi1>
    %cst_27 = arith.constant -1.000000e+09 : f32
    %39 = vector.shape_cast %38 : vector<1x2x1x8xi1> to vector<1x2x1x8xi1>
    %40 = vector.broadcast %39 : vector<1x2x1x8xi1> to vector<4x2x8x8xi1>
    %41 = vector.broadcast %cst_27 : f32 to vector<4x2x8x8xf32>
    %42 = arith.select %40, %41, %33 : vector<4x2x8x8xi1>, vector<4x2x8x8xf32>
    %cst_28 = arith.constant dense<0xFF800000> : vector<4x2x8xf32>
    %43 = vector.multi_reduction <maximumf>, %42, %cst_28 [3] : vector<4x2x8x8xf32> to vector<4x2x8xf32>
    %44 = vector.shape_cast %43 : vector<4x2x8xf32> to vector<4x2x8x1xf32>
    %45 = vector.broadcast %44 : vector<4x2x8x1xf32> to vector<4x2x8x8xf32>
    %46 = arith.subf %42, %45 : vector<4x2x8x8xf32>
    %47 = math.exp %46 : vector<4x2x8x8xf32>
    %cst_29 = arith.constant dense<0.000000e+00> : vector<4x2x8xf32>
    %48 = vector.multi_reduction <add>, %47, %cst_29 [3] : vector<4x2x8x8xf32> to vector<4x2x8xf32>
    %49 = vector.shape_cast %48 : vector<4x2x8xf32> to vector<4x2x8x1xf32>
    %50 = tpu.reciprocal %49 {approx = true} : vector<4x2x8x1xf32> -> vector<4x2x8x1xf32>
    %51 = vector.broadcast %50 : vector<4x2x8x1xf32> to vector<4x2x8x8xf32>
    %52 = arith.mulf %47, %51 : vector<4x2x8x8xf32>
    %53 = vector.shape_cast %52 : vector<4x2x8x8xf32> to vector<8x8x8xf32>
    %54 = arith.truncf %53 : vector<8x8x8xf32> to vector<8x8x8xbf16>
    "tpu.trace_start"() <{level = 10 : i32, message = "gqk,gkd->gqd"}> : () -> ()
    %cst_30 = arith.constant dense<0.000000e+00> : vector<8x8x8xf32>
    %55 = tpu.matmul %54, %29, %cst_30 {dimension_numbers = #tpu.dot_dimension_numbers<[2], [1], [1], [2], [0, 0, 0, 1, 1, 2], [0], [0]>} : vector<8x8x8xbf16>, vector<8x8x8xbf16>, vector<8x8x8xf32> -> vector<8x8x8xf32>
    "tpu.trace_stop"() : () -> ()
    %56 = vector.shape_cast %55 : vector<8x8x8xf32> to vector<4x16x8xf32>
    %57 = arith.truncf %56 : vector<4x16x8xf32> to vector<4x16x8xbf16>
    %c0_31 = arith.constant 0 : index
    %c0_32 = arith.constant 0 : index
    %c0_33 = arith.constant 0 : index
    %58 = vector.load %arg9[%c0_31, %c0_32, %c0_33] : memref<4x8x32xbf16, #tpu.memory_space<vmem>>, vector<4x8x32xbf16>
    "tpu.trace_start"() <{level = 10 : i32, message = "hxd,hdm->hxm"}> : () -> ()
    %cst_34 = arith.constant dense<0.000000e+00> : vector<4x16x32xf32>
    %59 = tpu.matmul %57, %58, %cst_34 {dimension_numbers = #tpu.dot_dimension_numbers<[2], [1], [1], [2], [0, 0, 0, 1, 1, 2], [0], [0]>} : vector<4x16x8xbf16>, vector<4x8x32xbf16>, vector<4x16x32xf32> -> vector<4x16x32xf32>
    "tpu.trace_stop"() : () -> ()
    %cst_35 = arith.constant dense<0.000000e+00> : vector<16x32xf32>
    %60 = vector.multi_reduction <add>, %59, %cst_35 [0] : vector<4x16x32xf32> to vector<16x32xf32>
    %cst_36 = arith.constant dense<0.000000e+00> : vector<16xf32>
    %61 = vector.multi_reduction <add>, %60, %cst_36 [1] : vector<16x32xf32> to vector<16xf32>
    %62 = vector.shape_cast %61 : vector<16xf32> to vector<16x1xf32>
    %cst_37 = arith.constant 3.200000e+01 : f32
    %63 = vector.broadcast %cst_37 : f32 to vector<16x1xf32>
    %64 = arith.divf %62, %63 : vector<16x1xf32>
    %65 = vector.broadcast %64 : vector<16x1xf32> to vector<16x32xf32>
    %66 = arith.subf %60, %65 : vector<16x32xf32>
    %67 = arith.mulf %66, %66 : vector<16x32xf32>
    %cst_38 = arith.constant dense<0.000000e+00> : vector<16xf32>
    %68 = vector.multi_reduction <add>, %67, %cst_38 [1] : vector<16x32xf32> to vector<16xf32>
    %69 = vector.shape_cast %68 : vector<16xf32> to vector<16x1xf32>
    %cst_39 = arith.constant 3.200000e+01 : f32
    %70 = vector.broadcast %cst_39 : f32 to vector<16x1xf32>
    %71 = arith.divf %69, %70 : vector<16x1xf32>
    %72 = vector.broadcast %64 : vector<16x1xf32> to vector<16x32xf32>
    %73 = arith.subf %60, %72 : vector<16x32xf32>
    %cst_40 = arith.constant 9.99999974E-6 : f32
    %74 = vector.broadcast %cst_40 : f32 to vector<16x1xf32>
    %75 = arith.addf %71, %74 : vector<16x1xf32>
    %76 = math.rsqrt %75 : vector<16x1xf32>
    %77 = vector.broadcast %76 : vector<16x1xf32> to vector<16x32xf32>
    %78 = arith.mulf %73, %77 : vector<16x32xf32>
    %c0_41 = arith.constant 0 : index
    %c0_42 = arith.constant 0 : index
    %79 = vector.load %arg10[%c0_41, %c0_42] : memref<1x32xf32, #tpu.memory_space<vmem>>, vector<1x32xf32>
    %80 = vector.shape_cast %79 : vector<1x32xf32> to vector<32xf32>
    %81 = vector.shape_cast %80 : vector<32xf32> to vector<1x32xf32>
    %82 = vector.broadcast %81 : vector<1x32xf32> to vector<16x32xf32>
    %83 = arith.mulf %78, %82 : vector<16x32xf32>
    %c0_43 = arith.constant 0 : index
    %c0_44 = arith.constant 0 : index
    %84 = vector.load %arg11[%c0_43, %c0_44] : memref<1x32xf32, #tpu.memory_space<vmem>>, vector<1x32xf32>
    %85 = vector.shape_cast %84 : vector<1x32xf32> to vector<32xf32>
    %86 = vector.shape_cast %85 : vector<32xf32> to vector<1x32xf32>
    %87 = vector.broadcast %86 : vector<1x32xf32> to vector<16x32xf32>
    %88 = arith.addf %83, %87 : vector<16x32xf32>
    %89 = vector.shape_cast %88 : vector<16x32xf32> to vector<2x8x32xf32>
    %c0_45 = arith.constant 0 : index
    %c0_46 = arith.constant 0 : index
    %c0_47 = arith.constant 0 : index
    %90 = vector.load %arg12[%c0_45, %c0_46, %c0_47] : memref<2x8x32xf32, #tpu.memory_space<vmem>>, vector<2x8x32xf32>
    tpu.vector_store %arg12[%c0_45, %c0_46, %c0_47], %89 {strides = array<i32>} : memref<2x8x32xf32, #tpu.memory_space<vmem>>, vector<2x8x32xf32>,
    return
  }
  func.func @transform_0(%arg0: i32) -> (i32, i32, i32) {
    %c0_i32 = arith.constant 0 : i32
    %c0_i32_0 = arith.constant 0 : i32
    %c0_i32_1 = arith.constant 0 : i32
    return %arg0, %c0_i32, %c0_i32_0 : i32, i32, i32
  }
  func.func @transform_1(%arg0: i32) -> (i32, i32, i32) {
    %c0_i32 = arith.constant 0 : i32
    %c0_i32_0 = arith.constant 0 : i32
    %c0_i32_1 = arith.constant 0 : i32
    return %arg0, %c0_i32, %c0_i32_0 : i32, i32, i32
  }
  func.func @transform_2(%arg0: i32) -> (i32, i32, i32) {
    %c0_i32 = arith.constant 0 : i32
    %c0_i32_0 = arith.constant 0 : i32
    %c0_i32_1 = arith.constant 0 : i32
    return %arg0, %c0_i32, %c0_i32_0 : i32, i32, i32
  }
  func.func @transform_3(%arg0: i32) -> (i32, i32, i32, i32) {
    %c0_i32 = arith.constant 0 : i32
    %c0_i32_0 = arith.constant 0 : i32
    %c0_i32_1 = arith.constant 0 : i32
    %c0_i32_2 = arith.constant 0 : i32
    return %c0_i32, %arg0, %c0_i32_0, %c0_i32_1 : i32, i32, i32, i32
  }
  func.func @transform_4(%arg0: i32) -> (i32, i32, i32) {
    %c0_i32 = arith.constant 0 : i32
    %c0_i32_0 = arith.constant 0 : i32
    %c0_i32_1 = arith.constant 0 : i32
    return %arg0, %c0_i32, %c0_i32_0 : i32, i32, i32
  }
  func.func @transform_5(%arg0: i32) -> (i32, i32, i32) {
    %c0_i32 = arith.constant 0 : i32
    %c0_i32_0 = arith.constant 0 : i32
    %c0_i32_1 = arith.constant 0 : i32
    %c0_i32_2 = arith.constant 0 : i32
    return %c0_i32, %c0_i32_0, %c0_i32_1 : i32, i32, i32
  }
  func.func @transform_6(%arg0: i32) -> (i32, i32, i32) {
    %c0_i32 = arith.constant 0 : i32
    %c0_i32_0 = arith.constant 0 : i32
    %c0_i32_1 = arith.constant 0 : i32
    %c0_i32_2 = arith.constant 0 : i32
    return %c0_i32, %c0_i32_0, %c0_i32_1 : i32, i32, i32
  }
  func.func @transform_7(%arg0: i32) -> (i32, i32, i32) {
    %c0_i32 = arith.constant 0 : i32
    %c0_i32_0 = arith.constant 0 : i32
    %c0_i32_1 = arith.constant 0 : i32
    %c0_i32_2 = arith.constant 0 : i32
    return %c0_i32, %c0_i32_0, %c0_i32_1 : i32, i32, i32
  }
  func.func @transform_8(%arg0: i32) -> (i32, i32, i32) {
    %c0_i32 = arith.constant 0 : i32
    %c0_i32_0 = arith.constant 0 : i32
    %c0_i32_1 = arith.constant 0 : i32
    %c0_i32_2 = arith.constant 0 : i32
    return %c0_i32, %c0_i32_0, %c0_i32_1 : i32, i32, i32
  }
  func.func @transform_9(%arg0: i32) -> (i32, i32) {
    %c0_i32 = arith.constant 0 : i32
    %c0_i32_0 = arith.constant 0 : i32
    %c0_i32_1 = arith.constant 0 : i32
    return %c0_i32, %c0_i32_0 : i32, i32
  }
  func.func @transform_10(%arg0: i32) -> (i32, i32) {
    %c0_i32 = arith.constant 0 : i32
    %c0_i32_0 = arith.constant 0 : i32
    %c0_i32_1 = arith.constant 0 : i32
    return %c0_i32, %c0_i32_0 : i32, i32
  }
  func.func @transform_11(%arg0: i32) -> (i32, i32, i32) {
    %c0_i32 = arith.constant 0 : i32
    %c0_i32_0 = arith.constant 0 : i32
    %c0_i32_1 = arith.constant 0 : i32
    return %arg0, %c0_i32, %c0_i32_0 : i32, i32, i32
  }
}

</mosaic_0001>

<llo_original>
// kernel: tpu_custom_call.1
$region0: #{tpu_custom_call.1}
  #allocation0 [shape = 'u32[]', space=smem, size = 0x4, offset = 0x4, fixed_abs, tag = 'smem constant byte address 0x4 - core index']
  #allocation1 [shape = 'u32[144,128]{1,0:T(1,128)}', space=vmem, size = 0x12000, scoped, tag = 'internal scratch']
  %s0 = inlined_call_operand.vmem [shape: f32[2,8,32], index: 0, kind: input, shape index: {}]
  %s1 = inlined_call_operand.vmem [shape: f32[2,8,32], index: 1, kind: input, shape index: {}]
  %s2 = inlined_call_operand.vmem [shape: f32[2,8,32], index: 2, kind: input, shape index: {}]
  %s3 = inlined_call_operand.vmem [shape: f32[4,2,8,8], index: 3, kind: input, shape index: {}]
  %s4 = inlined_call_operand.vmem [shape: s32[1,2,8], index: 4, kind: input, shape index: {}]
  %s5 = inlined_call_operand.vmem [shape: bf16[4,32,8], index: 5, kind: input, shape index: {}]
  %s6 = inlined_call_operand.vmem [shape: bf16[4,32,8], index: 6, kind: input, shape index: {}]
  %s7 = inlined_call_operand.vmem [shape: bf16[4,32,8], index: 7, kind: input, shape index: {}]
  %s8 = inlined_call_operand.vmem [shape: bf16[4,8,32], index: 8, kind: input, shape index: {}]
  %s9 = inlined_call_operand.vmem [shape: f32[1,32], index: 9, kind: input, shape index: {}]
  %s10 = inlined_call_operand.vmem [shape: f32[1,32], index: 10, kind: input, shape index: {}]
  %s11 = inlined_call_operand.hbm [shape: f32[2,8,32], index: 11, kind: output, shape index: {}]
  %s12 = sld [smem:[#allocation0]]
  $region54: #{tpu_custom_call.1} parent=0
    _
  %s14 = ssub.s32 1, %s12
  %s15 = scalar_select 0, %s14, %s12
  $region1: #{tpu_custom_call.1} parent=0
    #allocation2 [shape = 'u8[8192]{0}', space=vmem, size = 0x2000, scoped, tag = 'output window, operand 0, single buffered']
    #allocation3 [shape = 's32[1]{0}', space=sflag, size = 0x4, scoped, tag = 'scoped memory for tpu_custom_call.1']
    %16 = vsyncpa [#allocation3], 0
    // Predicated region
    $region2: #{tpu_custom_call.1} parent=1 // pred_check
      _
    $region3: #{tpu_custom_call.1} parent=1 // pred_check_branch
      %18 = sbr.rel (0) target = $region5
    $region4: #{tpu_custom_call.1} parent=1 // pred_region
      _
    $region5: #{tpu_custom_call.1} parent=1 // pred_fallthru
      _
    // Predicated region
    $region6: #{tpu_custom_call.1} parent=1 // pred_check
      _
    $region7: #{tpu_custom_call.1} parent=1 // pred_check_branch
      %20 = sbr.rel (0) target = $region9
    $region8: #{tpu_custom_call.1} parent=1 // pred_region
      _
    $region9: #{tpu_custom_call.1} parent=1 // pred_fallthru
      _
    // Predicated region
    $region10: #{tpu_custom_call.1} parent=1 // pred_check
      _
    $region11: #{tpu_custom_call.1} parent=1 // pred_check_branch
      %22 = sbr.rel (0) target = $region13
    $region12: #{tpu_custom_call.1} parent=1 // pred_region
      _
    $region13: #{tpu_custom_call.1} parent=1 // pred_fallthru
      _
    // Predicated region
    $region14: #{tpu_custom_call.1} parent=1 // pred_check
      _
    $region15: #{tpu_custom_call.1} parent=1 // pred_check_branch
      %24 = sbr.rel (0) target = $region17
    $region16: #{tpu_custom_call.1} parent=1 // pred_region
      _
    $region17: #{tpu_custom_call.1} parent=1 // pred_fallthru
      _
    // Predicated region
    $region18: #{tpu_custom_call.1} parent=1 // pred_check
      _
    $region19: #{tpu_custom_call.1} parent=1 // pred_check_branch
      %26 = sbr.rel (0) target = $region21
    $region20: #{tpu_custom_call.1} parent=1 // pred_region
      _
    $region21: #{tpu_custom_call.1} parent=1 // pred_fallthru
      _
    // Predicated region
    $region22: #{tpu_custom_call.1} parent=1 // pred_check
      _
    $region23: #{tpu_custom_call.1} parent=1 // pred_check_branch
      %28 = sbr.rel (0) target = $region25
    $region24: #{tpu_custom_call.1} parent=1 // pred_region
      _
    $region25: #{tpu_custom_call.1} parent=1 // pred_fallthru
      _
    // Predicated region
    $region26: #{tpu_custom_call.1} parent=1 // pred_check
      _
    $region27: #{tpu_custom_call.1} parent=1 // pred_check_branch
      %30 = sbr.rel (0) target = $region29
    $region28: #{tpu_custom_call.1} parent=1 // pred_region
      _
    $region29: #{tpu_custom_call.1} parent=1 // pred_fallthru
      _
    // Predicated region
    $region30: #{tpu_custom_call.1} parent=1 // pred_check
      _
    $region31: #{tpu_custom_call.1} parent=1 // pred_check_branch
      %32 = sbr.rel (0) target = $region33
    $region32: #{tpu_custom_call.1} parent=1 // pred_region
      _
    $region33: #{tpu_custom_call.1} parent=1 // pred_fallthru
      _
    // Predicated region
    $region34: #{tpu_custom_call.1} parent=1 // pred_check
      _
    $region35: #{tpu_custom_call.1} parent=1 // pred_check_branch
      %34 = sbr.rel (0) target = $region37
    $region36: #{tpu_custom_call.1} parent=1 // pred_region
      _
    $region37: #{tpu_custom_call.1} parent=1 // pred_fallthru
      _
    // Predicated region
    $region38: #{tpu_custom_call.1} parent=1 // pred_check
      _
    $region39: #{tpu_custom_call.1} parent=1 // pred_check_branch
      %36 = sbr.rel (0) target = $region41
    $region40: #{tpu_custom_call.1} parent=1 // pred_region
      _
    $region41: #{tpu_custom_call.1} parent=1 // pred_fallthru
      _
    // Predicated region
    $region42: #{tpu_custom_call.1} parent=1 // pred_check
      _
    $region43: #{tpu_custom_call.1} parent=1 // pred_check_branch
      %38 = sbr.rel (0) target = $region45
    $region44: #{tpu_custom_call.1} parent=1 // pred_region
      _
    $region45: #{tpu_custom_call.1} parent=1 // pred_fallthru
      _
    %v40 = vld [vmem:[%s0] sm:$0xff]
    %v41 = vld [vmem:[%s0 + $0x8] sm:$0xff]
    %v42 = vpack.c.bf16 %v41, %v40
    %v43 = vld [vmem:[%s1] sm:$0xff]
    %v44 = vld [vmem:[%s1 + $0x8] sm:$0xff]
    %v45 = vpack.c.bf16 %v44, %v43
    %v46 = vld [vmem:[%s2] sm:$0xff]
    %v47 = vld [vmem:[%s2 + $0x8] sm:$0xff]
    %v48 = vpack.c.bf16 %v47, %v46
    %v49 = vld [vmem:[%s5] sm:$0xf]
    %v50 = vld [vmem:[%s5 + $0x4] sm:$0xf]
    %v51 = vld [vmem:[%s5 + $0x8] sm:$0xf]
    %v52 = vld [vmem:[%s5 + $0xc] sm:$0xf]
    %v53 = vld [vmem:[%s5 + $0x10] sm:$0xf]
    %v54 = vld [vmem:[%s5 + $0x14] sm:$0xf]
    %v55 = vld [vmem:[%s5 + $0x18] sm:$0xf]
    %v56 = vld [vmem:[%s5 + $0x1c] sm:$0xf]
    %v57 = vld [vmem:[%s5 + $0x20] sm:$0xf]
    %v58 = vld [vmem:[%s5 + $0x24] sm:$0xf]
    %v59 = vld [vmem:[%s5 + $0x28] sm:$0xf]
    %v60 = vld [vmem:[%s5 + $0x2c] sm:$0xf]
    %v61 = vld [vmem:[%s5 + $0x30] sm:$0xf]
    %v62 = vld [vmem:[%s5 + $0x34] sm:$0xf]
    %v63 = vld [vmem:[%s5 + $0x38] sm:$0xf]
    %v64 = vld [vmem:[%s5 + $0x3c] sm:$0xf]
    %v69 = vunpack.c.l.b16 %v49
    %v70 = vunpack.c.l.b16 %v50
    %v71 = vunpack.c.l.b16 %v51
    %v72 = vunpack.c.l.b16 %v52
    %v73 = vpack.c.b16 %v70, %v69
    %v74 = vpack.c.b16 %v72, %v71
    %vm77 = vcmask 261120
    %v79 = vsel %vm77, %v42, 0
    %81 = vmatprep.subr.bf16.mxu0 0
    %82 = vmatpush1.bf16.msra.mxu0 0
    %83 = vmatprep.subr.bf16.mxu0 0
    %84 = vmatpush1.bf16.msra.mxu0 0
    %85 = vmatprep.subr.bf16.mxu0 0
    %86 = vmatpush1.bf16.msra.mxu0 0
    %87 = vmatprep.subr.bf16.mxu0 0
    %88 = vmatpush1.bf16.msra.mxu0 0
    %89 = vmatprep.subr.bf16.mxu0 0
    %90 = vmatpush1.bf16.msra.mxu0 0
    %91 = vmatprep.subr.bf16.mxu0 0
    %92 = vmatpush1.bf16.msra.mxu0 0
    %93 = vmatprep.subr.bf16.mxu0 0
    %94 = vmatpush1.bf16.msra.mxu0 %v74
    %95 = vmatprep.subr.bf16.mxu0 0
    %96 = vmatpush1.bf16.msra.mxu0 %v73
    %97 = vmatprep.subr.bf16.mxu0 0
    %98 = vmatpush2.bf16.msra.mxu0 0
    %99 = vmatprep.subr.bf16.mxu0 0
    %100 = vmatpush2.bf16.msra.mxu0 0
    %101 = vmatprep.subr.bf16.mxu0 0
    %102 = vmatpush2.bf16.msra.mxu0 0
    %103 = vmatprep.subr.bf16.mxu0 0
    %104 = vmatpush2.bf16.msra.mxu0 0
    %105 = vmatprep.subr.bf16.mxu0 0
    %106 = vmatpush2.bf16.msra.mxu0 0
    %107 = vmatprep.subr.bf16.mxu0 0
    %108 = vmatpush2.bf16.msra.mxu0 0
    %109 = vmatprep.subr.bf16.mxu0 0
    %110 = vmatpush2.bf16.msra.mxu0 0
    %111 = vmatprep.subr.bf16.mxu0 0
    %112 = vmatpush2.bf16.msra.mxu0 0
    %113 = vmatprep.mubr.bf16.mxu0 0
    %114 = vmatmul.mubr.bf16.gmra.mxu0 %v79
    %v115 = vpop.f32.mrf.mxu0
    %v116 = vadd.f32 0.0, %v115
    %v117 = vpop.f32.mrf.mxu0
    %v118 = vpop.f32.mrf.mxu0
    %v119 = vadd.f32 0.0, %v118
    %v120 = vpop.f32.mrf.mxu0
    %121 = vdwg.mxu0
    %v126 = vunpack.c.l.b16 %v53
    %v127 = vunpack.c.l.b16 %v54
    %v128 = vunpack.c.l.b16 %v55
    %v129 = vunpack.c.l.b16 %v56
    %v130 = vpack.c.b16 %v127, %v126
    %v131 = vpack.c.b16 %v129, %v128
    %134 = vmatprep.subr.bf16.mxu0 0
    %135 = vmatpush1.bf16.msra.mxu0 0
    %136 = vmatprep.subr.bf16.mxu0 0
    %137 = vmatpush1.bf16.msra.mxu0 0
    %138 = vmatprep.subr.bf16.mxu0 0
    %139 = vmatpush1.bf16.msra.mxu0 0
    %140 = vmatprep.subr.bf16.mxu0 0
    %141 = vmatpush1.bf16.msra.mxu0 0
    %142 = vmatprep.subr.bf16.mxu0 0
    %143 = vmatpush1.bf16.msra.mxu0 0
    %144 = vmatprep.subr.bf16.mxu0 0
    %145 = vmatpush1.bf16.msra.mxu0 0
    %146 = vmatprep.subr.bf16.mxu0 0
    %147 = vmatpush1.bf16.msra.mxu0 %v131
    %148 = vmatprep.subr.bf16.mxu0 0
    %149 = vmatpush1.bf16.msra.mxu0 %v130
    %150 = vmatprep.subr.bf16.mxu0 0
    %151 = vmatpush2.bf16.msra.mxu0 0
    %152 = vmatprep.subr.bf16.mxu0 0
    %153 = vmatpush2.bf16.msra.mxu0 0
    %154 = vmatprep.subr.bf16.mxu0 0
    %155 = vmatpush2.bf16.msra.mxu0 0
    %156 = vmatprep.subr.bf16.mxu0 0
    %157 = vmatpush2.bf16.msra.mxu0 0
    %158 = vmatprep.subr.bf16.mxu0 0
    %159 = vmatpush2.bf16.msra.mxu0 0
    %160 = vmatprep.subr.bf16.mxu0 0
    %161 = vmatpush2.bf16.msra.mxu0 0
    %162 = vmatprep.subr.bf16.mxu0 0
    %163 = vmatpush2.bf16.msra.mxu0 0
    %164 = vmatprep.subr.bf16.mxu0 0
    %165 = vmatpush2.bf16.msra.mxu0 0
    %166 = vmatprep.mubr.bf16.mxu0 0
    %167 = vmatmul.mubr.bf16.gmra.mxu0 %v79
    %v168 = vpop.f32.mrf.mxu0
    %v169 = vadd.f32 0.0, %v168
    %v170 = vpop.f32.mrf.mxu0
    %v171 = vpop.f32.mrf.mxu0
    %v172 = vadd.f32 0.0, %v171
    %v173 = vpop.f32.mrf.mxu0
    %174 = vdwg.mxu0
    %v179 = vunpack.c.l.b16 %v57
    %v180 = vunpack.c.l.b16 %v58
    %v181 = vunpack.c.l.b16 %v59
    %v182 = vunpack.c.l.b16 %v60
    %v183 = vpack.c.b16 %v180, %v179
    %v184 = vpack.c.b16 %v182, %v181
    %187 = vmatprep.subr.bf16.mxu0 0
    %188 = vmatpush1.bf16.msra.mxu0 0
    %189 = vmatprep.subr.bf16.mxu0 0
    %190 = vmatpush1.bf16.msra.mxu0 0
    %191 = vmatprep.subr.bf16.mxu0 0
    %192 = vmatpush1.bf16.msra.mxu0 0
    %193 = vmatprep.subr.bf16.mxu0 0
    %194 = vmatpush1.bf16.msra.mxu0 0
    %195 = vmatprep.subr.bf16.mxu0 0
    %196 = vmatpush1.bf16.msra.mxu0 0
    %197 = vmatprep.subr.bf16.mxu0 0
    %198 = vmatpush1.bf16.msra.mxu0 0
    %199 = vmatprep.subr.bf16.mxu0 0
    %200 = vmatpush1.bf16.msra.mxu0 %v184
    %201 = vmatprep.subr.bf16.mxu0 0
    %202 = vmatpush1.bf16.msra.mxu0 %v183
    %203 = vmatprep.subr.bf16.mxu0 0
    %204 = vmatpush2.bf16.msra.mxu0 0
    %205 = vmatprep.subr.bf16.mxu0 0
    %206 = vmatpush2.bf16.msra.mxu0 0
    %207 = vmatprep.subr.bf16.mxu0 0
    %208 = vmatpush2.bf16.msra.mxu0 0
    %209 = vmatprep.subr.bf16.mxu0 0
    %210 = vmatpush2.bf16.msra.mxu0 0
    %211 = vmatprep.subr.bf16.mxu0 0
    %212 = vmatpush2.bf16.msra.mxu0 0
    %213 = vmatprep.subr.bf16.mxu0 0
    %214 = vmatpush2.bf16.msra.mxu0 0
    %215 = vmatprep.subr.bf16.mxu0 0
    %216 = vmatpush2.bf16.msra.mxu0 0
    %217 = vmatprep.subr.bf16.mxu0 0
    %218 = vmatpush2.bf16.msra.mxu0 0
    %219 = vmatprep.mubr.bf16.mxu0 0
    %220 = vmatmul.mubr.bf16.gmra.mxu0 %v79
    %v221 = vpop.f32.mrf.mxu0
    %v222 = vadd.f32 0.0, %v221
    %v223 = vpop.f32.mrf.mxu0
    %v224 = vpop.f32.mrf.mxu0
    %v225 = vadd.f32 0.0, %v224
    %v226 = vpop.f32.mrf.mxu0
    %227 = vdwg.mxu0
    %v232 = vunpack.c.l.b16 %v61
    %v233 = vunpack.c.l.b16 %v62
    %v234 = vunpack.c.l.b16 %v63
    %v235 = vunpack.c.l.b16 %v64
    %v236 = vpack.c.b16 %v233, %v232
    %v237 = vpack.c.b16 %v235, %v234
    %240 = vmatprep.subr.bf16.mxu0 0
    %241 = vmatpush1.bf16.msra.mxu0 0
    %242 = vmatprep.subr.bf16.mxu0 0
    %243 = vmatpush1.bf16.msra.mxu0 0
    %244 = vmatprep.subr.bf16.mxu0 0
    %245 = vmatpush1.bf16.msra.mxu0 0
    %246 = vmatprep.subr.bf16.mxu0 0
    %247 = vmatpush1.bf16.msra.mxu0 0
    %248 = vmatprep.subr.bf16.mxu0 0
    %249 = vmatpush1.bf16.msra.mxu0 0
    %250 = vmatprep.subr.bf16.mxu0 0
    %251 = vmatpush1.bf16.msra.mxu0 0
    %252 = vmatprep.subr.bf16.mxu0 0
    %253 = vmatpush1.bf16.msra.mxu0 %v237
    %254 = vmatprep.subr.bf16.mxu0 0
    %255 = vmatpush1.bf16.msra.mxu0 %v236
    %256 = vmatprep.subr.bf16.mxu0 0
    %257 = vmatpush2.bf16.msra.mxu0 0
    %258 = vmatprep.subr.bf16.mxu0 0
    %259 = vmatpush2.bf16.msra.mxu0 0
    %260 = vmatprep.subr.bf16.mxu0 0
    %261 = vmatpush2.bf16.msra.mxu0 0
    %262 = vmatprep.subr.bf16.mxu0 0
    %263 = vmatpush2.bf16.msra.mxu0 0
    %264 = vmatprep.subr.bf16.mxu0 0
    %265 = vmatpush2.bf16.msra.mxu0 0
    %266 = vmatprep.subr.bf16.mxu0 0
    %267 = vmatpush2.bf16.msra.mxu0 0
    %268 = vmatprep.subr.bf16.mxu0 0
    %269 = vmatpush2.bf16.msra.mxu0 0
    %270 = vmatprep.subr.bf16.mxu0 0
    %271 = vmatpush2.bf16.msra.mxu0 0
    %272 = vmatprep.mubr.bf16.mxu0 0
    %273 = vmatmul.mubr.bf16.gmra.mxu0 %v79
    %v274 = vpop.f32.mrf.mxu0
    %v275 = vadd.f32 0.0, %v274
    %v276 = vpop.f32.mrf.mxu0
    %v277 = vpop.f32.mrf.mxu0
    %v278 = vadd.f32 0.0, %v277
    %v279 = vpop.f32.mrf.mxu0
    %280 = vdwg.mxu0
    %v281 = vld [vmem:[%s6] sm:$0xf]
    %v282 = vld [vmem:[%s6 + $0x4] sm:$0xf]
    %v283 = vld [vmem:[%s6 + $0x8] sm:$0xf]
    %v284 = vld [vmem:[%s6 + $0xc] sm:$0xf]
    %v285 = vld [vmem:[%s6 + $0x10] sm:$0xf]
    %v286 = vld [vmem:[%s6 + $0x14] sm:$0xf]
    %v287 = vld [vmem:[%s6 + $0x18] sm:$0xf]
    %v288 = vld [vmem:[%s6 + $0x1c] sm:$0xf]
    %v289 = vld [vmem:[%s6 + $0x20] sm:$0xf]
    %v290 = vld [vmem:[%s6 + $0x24] sm:$0xf]
    %v291 = vld [vmem:[%s6 + $0x28] sm:$0xf]
    %v292 = vld [vmem:[%s6 + $0x2c] sm:$0xf]
    %v293 = vld [vmem:[%s6 + $0x30] sm:$0xf]
    %v294 = vld [vmem:[%s6 + $0x34] sm:$0xf]
    %v295 = vld [vmem:[%s6 + $0x38] sm:$0xf]
    %v296 = vld [vmem:[%s6 + $0x3c] sm:$0xf]
    %v301 = vunpack.c.l.b16 %v281
    %v302 = vunpack.c.l.b16 %v282
    %v303 = vunpack.c.l.b16 %v283
    %v304 = vunpack.c.l.b16 %v284
    %v305 = vpack.c.b16 %v302, %v301
    %v306 = vpack.c.b16 %v304, %v303
    %v310 = vsel %vm77, %v45, 0
    %312 = vmatprep.subr.bf16.mxu0 0
    %313 = vmatpush1.bf16.msra.mxu0 0
    %314 = vmatprep.subr.bf16.mxu0 0
    %315 = vmatpush1.bf16.msra.mxu0 0
    %316 = vmatprep.subr.bf16.mxu0 0
    %317 = vmatpush1.bf16.msra.mxu0 0
    %318 = vmatprep.subr.bf16.mxu0 0
    %319 = vmatpush1.bf16.msra.mxu0 0
    %320 = vmatprep.subr.bf16.mxu0 0
    %321 = vmatpush1.bf16.msra.mxu0 0
    %322 = vmatprep.subr.bf16.mxu0 0
    %323 = vmatpush1.bf16.msra.mxu0 0
    %324 = vmatprep.subr.bf16.mxu0 0
    %325 = vmatpush1.bf16.msra.mxu0 %v306
    %326 = vmatprep.subr.bf16.mxu0 0
    %327 = vmatpush1.bf16.msra.mxu0 %v305
    %328 = vmatprep.subr.bf16.mxu0 0
    %329 = vmatpush2.bf16.msra.mxu0 0
    %330 = vmatprep.subr.bf16.mxu0 0
    %331 = vmatpush2.bf16.msra.mxu0 0
    %332 = vmatprep.subr.bf16.mxu0 0
    %333 = vmatpush2.bf16.msra.mxu0 0
    %334 = vmatprep.subr.bf16.mxu0 0
    %335 = vmatpush2.bf16.msra.mxu0 0
    %336 = vmatprep.subr.bf16.mxu0 0
    %337 = vmatpush2.bf16.msra.mxu0 0
    %338 = vmatprep.subr.bf16.mxu0 0
    %339 = vmatpush2.bf16.msra.mxu0 0
    %340 = vmatprep.subr.bf16.mxu0 0
    %341 = vmatpush2.bf16.msra.mxu0 0
    %342 = vmatprep.subr.bf16.mxu0 0
    %343 = vmatpush2.bf16.msra.mxu0 0
    %344 = vmatprep.mubr.bf16.mxu0 0
    %345 = vmatmul.mubr.bf16.gmra.mxu0 %v310
    %v346 = vpop.f32.mrf.mxu0
    %v347 = vadd.f32 0.0, %v346
    %v348 = vpop.f32.mrf.mxu0
    %v349 = vpop.f32.mrf.mxu0
    %v350 = vadd.f32 0.0, %v349
    %v351 = vpop.f32.mrf.mxu0
    %352 = vdwg.mxu0
    %v357 = vunpack.c.l.b16 %v285
    %v358 = vunpack.c.l.b16 %v286
    %v359 = vunpack.c.l.b16 %v287
    %v360 = vunpack.c.l.b16 %v288
    %v361 = vpack.c.b16 %v358, %v357
    %v362 = vpack.c.b16 %v360, %v359
    %365 = vmatprep.subr.bf16.mxu0 0
    %366 = vmatpush1.bf16.msra.mxu0 0
    %367 = vmatprep.subr.bf16.mxu0 0
    %368 = vmatpush1.bf16.msra.mxu0 0
    %369 = vmatprep.subr.bf16.mxu0 0
    %370 = vmatpush1.bf16.msra.mxu0 0
    %371 = vmatprep.subr.bf16.mxu0 0
    %372 = vmatpush1.bf16.msra.mxu0 0
    %373 = vmatprep.subr.bf16.mxu0 0
    %374 = vmatpush1.bf16.msra.mxu0 0
    %375 = vmatprep.subr.bf16.mxu0 0
    %376 = vmatpush1.bf16.msra.mxu0 0
    %377 = vmatprep.subr.bf16.mxu0 0
    %378 = vmatpush1.bf16.msra.mxu0 %v362
    %379 = vmatprep.subr.bf16.mxu0 0
    %380 = vmatpush1.bf16.msra.mxu0 %v361
    %381 = vmatprep.subr.bf16.mxu0 0
    %382 = vmatpush2.bf16.msra.mxu0 0
    %383 = vmatprep.subr.bf16.mxu0 0
    %384 = vmatpush2.bf16.msra.mxu0 0
    %385 = vmatprep.subr.bf16.mxu0 0
    %386 = vmatpush2.bf16.msra.mxu0 0
    %387 = vmatprep.subr.bf16.mxu0 0
    %388 = vmatpush2.bf16.msra.mxu0 0
    %389 = vmatprep.subr.bf16.mxu0 0
    %390 = vmatpush2.bf16.msra.mxu0 0
    %391 = vmatprep.subr.bf16.mxu0 0
    %392 = vmatpush2.bf16.msra.mxu0 0
    %393 = vmatprep.subr.bf16.mxu0 0
    %394 = vmatpush2.bf16.msra.mxu0 0
    %395 = vmatprep.subr.bf16.mxu0 0
    %396 = vmatpush2.bf16.msra.mxu0 0
    %397 = vmatprep.mubr.bf16.mxu0 0
    %398 = vmatmul.mubr.bf16.gmra.mxu0 %v310
    %v399 = vpop.f32.mrf.mxu0
    %v400 = vadd.f32 0.0, %v399
    %v401 = vpop.f32.mrf.mxu0
    %v402 = vpop.f32.mrf.mxu0
    %v403 = vadd.f32 0.0, %v402
    %v404 = vpop.f32.mrf.mxu0
    %405 = vdwg.mxu0
    %v410 = vunpack.c.l.b16 %v289
    %v411 = vunpack.c.l.b16 %v290
    %v412 = vunpack.c.l.b16 %v291
    %v413 = vunpack.c.l.b16 %v292
    %v414 = vpack.c.b16 %v411, %v410
    %v415 = vpack.c.b16 %v413, %v412
    %418 = vmatprep.subr.bf16.mxu0 0
    %419 = vmatpush1.bf16.msra.mxu0 0
    %420 = vmatprep.subr.bf16.mxu0 0
    %421 = vmatpush1.bf16.msra.mxu0 0
    %422 = vmatprep.subr.bf16.mxu0 0
    %423 = vmatpush1.bf16.msra.mxu0 0
    %424 = vmatprep.subr.bf16.mxu0 0
    %425 = vmatpush1.bf16.msra.mxu0 0
    %426 = vmatprep.subr.bf16.mxu0 0
    %427 = vmatpush1.bf16.msra.mxu0 0
    %428 = vmatprep.subr.bf16.mxu0 0
    %429 = vmatpush1.bf16.msra.mxu0 0
    %430 = vmatprep.subr.bf16.mxu0 0
    %431 = vmatpush1.bf16.msra.mxu0 %v415
    %432 = vmatprep.subr.bf16.mxu0 0
    %433 = vmatpush1.bf16.msra.mxu0 %v414
    %434 = vmatprep.subr.bf16.mxu0 0
    %435 = vmatpush2.bf16.msra.mxu0 0
    %436 = vmatprep.subr.bf16.mxu0 0
    %437 = vmatpush2.bf16.msra.mxu0 0
    %438 = vmatprep.subr.bf16.mxu0 0
    %439 = vmatpush2.bf16.msra.mxu0 0
    %440 = vmatprep.subr.bf16.mxu0 0
    %441 = vmatpush2.bf16.msra.mxu0 0
    %442 = vmatprep.subr.bf16.mxu0 0
    %443 = vmatpush2.bf16.msra.mxu0 0
    %444 = vmatprep.subr.bf16.mxu0 0
    %445 = vmatpush2.bf16.msra.mxu0 0
    %446 = vmatprep.subr.bf16.mxu0 0
    %447 = vmatpush2.bf16.msra.mxu0 0
    %448 = vmatprep.subr.bf16.mxu0 0
    %449 = vmatpush2.bf16.msra.mxu0 0
    %450 = vmatprep.mubr.bf16.mxu0 0
    %451 = vmatmul.mubr.bf16.gmra.mxu0 %v310
    %v452 = vpop.f32.mrf.mxu0
    %v453 = vadd.f32 0.0, %v452
    %v454 = vpop.f32.mrf.mxu0
    %v455 = vpop.f32.mrf.mxu0
    %v456 = vadd.f32 0.0, %v455
    %v457 = vpop.f32.mrf.mxu0
    %458 = vdwg.mxu0
    %v463 = vunpack.c.l.b16 %v293
    %v464 = vunpack.c.l.b16 %v294
    %v465 = vunpack.c.l.b16 %v295
    %v466 = vunpack.c.l.b16 %v296
    %v467 = vpack.c.b16 %v464, %v463
    %v468 = vpack.c.b16 %v466, %v465
    %471 = vmatprep.subr.bf16.mxu0 0
    %472 = vmatpush1.bf16.msra.mxu0 0
    %473 = vmatprep.subr.bf16.mxu0 0
    %474 = vmatpush1.bf16.msra.mxu0 0
    %475 = vmatprep.subr.bf16.mxu0 0
    %476 = vmatpush1.bf16.msra.mxu0 0
    %477 = vmatprep.subr.bf16.mxu0 0
    %478 = vmatpush1.bf16.msra.mxu0 0
    %479 = vmatprep.subr.bf16.mxu0 0
    %480 = vmatpush1.bf16.msra.mxu0 0
    %481 = vmatprep.subr.bf16.mxu0 0
    %482 = vmatpush1.bf16.msra.mxu0 0
    %483 = vmatprep.subr.bf16.mxu0 0
    %484 = vmatpush1.bf16.msra.mxu0 %v468
    %485 = vmatprep.subr.bf16.mxu0 0
    %486 = vmatpush1.bf16.msra.mxu0 %v467
    %487 = vmatprep.subr.bf16.mxu0 0
    %488 = vmatpush2.bf16.msra.mxu0 0
    %489 = vmatprep.subr.bf16.mxu0 0
    %490 = vmatpush2.bf16.msra.mxu0 0
    %491 = vmatprep.subr.bf16.mxu0 0
    %492 = vmatpush2.bf16.msra.mxu0 0
    %493 = vmatprep.subr.bf16.mxu0 0
    %494 = vmatpush2.bf16.msra.mxu0 0
    %495 = vmatprep.subr.bf16.mxu0 0
    %496 = vmatpush2.bf16.msra.mxu0 0
    %497 = vmatprep.subr.bf16.mxu0 0
    %498 = vmatpush2.bf16.msra.mxu0 0
    %499 = vmatprep.subr.bf16.mxu0 0
    %500 = vmatpush2.bf16.msra.mxu0 0
    %501 = vmatprep.subr.bf16.mxu0 0
    %502 = vmatpush2.bf16.msra.mxu0 0
    %503 = vmatprep.mubr.bf16.mxu0 0
    %504 = vmatmul.mubr.bf16.gmra.mxu0 %v310
    %v505 = vpop.f32.mrf.mxu0
    %v506 = vadd.f32 0.0, %v505
    %v507 = vpop.f32.mrf.mxu0
    %v508 = vpop.f32.mrf.mxu0
    %v509 = vadd.f32 0.0, %v508
    %v510 = vpop.f32.mrf.mxu0
    %511 = vdwg.mxu0
    %v512 = vld [vmem:[%s7] sm:$0xf]
    %v513 = vld [vmem:[%s7 + $0x4] sm:$0xf]
    %v514 = vld [vmem:[%s7 + $0x8] sm:$0xf]
    %v515 = vld [vmem:[%s7 + $0xc] sm:$0xf]
    %v516 = vld [vmem:[%s7 + $0x10] sm:$0xf]
    %v517 = vld [vmem:[%s7 + $0x14] sm:$0xf]
    %v518 = vld [vmem:[%s7 + $0x18] sm:$0xf]
    %v519 = vld [vmem:[%s7 + $0x1c] sm:$0xf]
    %v520 = vld [vmem:[%s7 + $0x20] sm:$0xf]
    %v521 = vld [vmem:[%s7 + $0x24] sm:$0xf]
    %v522 = vld [vmem:[%s7 + $0x28] sm:$0xf]
    %v523 = vld [vmem:[%s7 + $0x2c] sm:$0xf]
    %v524 = vld [vmem:[%s7 + $0x30] sm:$0xf]
    %v525 = vld [vmem:[%s7 + $0x34] sm:$0xf]
    %v526 = vld [vmem:[%s7 + $0x38] sm:$0xf]
    %v527 = vld [vmem:[%s7 + $0x3c] sm:$0xf]
    %v532 = vunpack.c.l.b16 %v512
    %v533 = vunpack.c.l.b16 %v513
    %v534 = vunpack.c.l.b16 %v514
    %v535 = vunpack.c.l.b16 %v515
    %v536 = vpack.c.b16 %v533, %v532
    %v537 = vpack.c.b16 %v535, %v534
    %v541 = vsel %vm77, %v48, 0
    %543 = vmatprep.subr.bf16.mxu0 0
    %544 = vmatpush1.bf16.msra.mxu0 0
    %545 = vmatprep.subr.bf16.mxu0 0
    %546 = vmatpush1.bf16.msra.mxu0 0
    %547 = vmatprep.subr.bf16.mxu0 0
    %548 = vmatpush1.bf16.msra.mxu0 0
    %549 = vmatprep.subr.bf16.mxu0 0
    %550 = vmatpush1.bf16.msra.mxu0 0
    %551 = vmatprep.subr.bf16.mxu0 0
    %552 = vmatpush1.bf16.msra.mxu0 0
    %553 = vmatprep.subr.bf16.mxu0 0
    %554 = vmatpush1.bf16.msra.mxu0 0
    %555 = vmatprep.subr.bf16.mxu0 0
    %556 = vmatpush1.bf16.msra.mxu0 %v537
    %557 = vmatprep.subr.bf16.mxu0 0
    %558 = vmatpush1.bf16.msra.mxu0 %v536
    %559 = vmatprep.subr.bf16.mxu0 0
    %560 = vmatpush2.bf16.msra.mxu0 0
    %561 = vmatprep.subr.bf16.mxu0 0
    %562 = vmatpush2.bf16.msra.mxu0 0
    %563 = vmatprep.subr.bf16.mxu0 0
    %564 = vmatpush2.bf16.msra.mxu0 0
    %565 = vmatprep.subr.bf16.mxu0 0
    %566 = vmatpush2.bf16.msra.mxu0 0
    %567 = vmatprep.subr.bf16.mxu0 0
    %568 = vmatpush2.bf16.msra.mxu0 0
    %569 = vmatprep.subr.bf16.mxu0 0
    %570 = vmatpush2.bf16.msra.mxu0 0
    %571 = vmatprep.subr.bf16.mxu0 0
    %572 = vmatpush2.bf16.msra.mxu0 0
    %573 = vmatprep.subr.bf16.mxu0 0
    %574 = vmatpush2.bf16.msra.mxu0 0
    %575 = vmatprep.mubr.bf16.mxu0 0
    %576 = vmatmul.mubr.bf16.gmra.mxu0 %v541
    %v577 = vpop.f32.mrf.mxu0
    %v578 = vadd.f32 0.0, %v577
    %v579 = vpop.f32.mrf.mxu0
    %v580 = vpop.f32.mrf.mxu0
    %v581 = vadd.f32 0.0, %v580
    %v582 = vpop.f32.mrf.mxu0
    %583 = vdwg.mxu0
    %v588 = vunpack.c.l.b16 %v516
    %v589 = vunpack.c.l.b16 %v517
    %v590 = vunpack.c.l.b16 %v518
    %v591 = vunpack.c.l.b16 %v519
    %v592 = vpack.c.b16 %v589, %v588
    %v593 = vpack.c.b16 %v591, %v590
    %596 = vmatprep.subr.bf16.mxu0 0
    %597 = vmatpush1.bf16.msra.mxu0 0
    %598 = vmatprep.subr.bf16.mxu0 0
    %599 = vmatpush1.bf16.msra.mxu0 0
    %600 = vmatprep.subr.bf16.mxu0 0
    %601 = vmatpush1.bf16.msra.mxu0 0
    %602 = vmatprep.subr.bf16.mxu0 0
    %603 = vmatpush1.bf16.msra.mxu0 0
    %604 = vmatprep.subr.bf16.mxu0 0
    %605 = vmatpush1.bf16.msra.mxu0 0
    %606 = vmatprep.subr.bf16.mxu0 0
    %607 = vmatpush1.bf16.msra.mxu0 0
    %608 = vmatprep.subr.bf16.mxu0 0
    %609 = vmatpush1.bf16.msra.mxu0 %v593
    %610 = vmatprep.subr.bf16.mxu0 0
    %611 = vmatpush1.bf16.msra.mxu0 %v592
    %612 = vmatprep.subr.bf16.mxu0 0
    %613 = vmatpush2.bf16.msra.mxu0 0
    %614 = vmatprep.subr.bf16.mxu0 0
    %615 = vmatpush2.bf16.msra.mxu0 0
    %616 = vmatprep.subr.bf16.mxu0 0
    %617 = vmatpush2.bf16.msra.mxu0 0
    %618 = vmatprep.subr.bf16.mxu0 0
    %619 = vmatpush2.bf16.msra.mxu0 0
    %620 = vmatprep.subr.bf16.mxu0 0
    %621 = vmatpush2.bf16.msra.mxu0 0
    %622 = vmatprep.subr.bf16.mxu0 0
    %623 = vmatpush2.bf16.msra.mxu0 0
    %624 = vmatprep.subr.bf16.mxu0 0
    %625 = vmatpush2.bf16.msra.mxu0 0
    %626 = vmatprep.subr.bf16.mxu0 0
    %627 = vmatpush2.bf16.msra.mxu0 0
    %628 = vmatprep.mubr.bf16.mxu0 0
    %629 = vmatmul.mubr.bf16.gmra.mxu0 %v541
    %v630 = vpop.f32.mrf.mxu0
    %v631 = vadd.f32 0.0, %v630
    %v632 = vpop.f32.mrf.mxu0
    %v633 = vpop.f32.mrf.mxu0
    %v634 = vadd.f32 0.0, %v633
    %v635 = vpop.f32.mrf.mxu0
    %636 = vdwg.mxu0
    %v641 = vunpack.c.l.b16 %v520
    %v642 = vunpack.c.l.b16 %v521
    %v643 = vunpack.c.l.b16 %v522
    %v644 = vunpack.c.l.b16 %v523
    %v645 = vpack.c.b16 %v642, %v641
    %v646 = vpack.c.b16 %v644, %v643
    %649 = vmatprep.subr.bf16.mxu0 0
    %650 = vmatpush1.bf16.msra.mxu0 0
    %651 = vmatprep.subr.bf16.mxu0 0
    %652 = vmatpush1.bf16.msra.mxu0 0
    %653 = vmatprep.subr.bf16.mxu0 0
    %654 = vmatpush1.bf16.msra.mxu0 0
    %655 = vmatprep.subr.bf16.mxu0 0
    %656 = vmatpush1.bf16.msra.mxu0 0
    %657 = vmatprep.subr.bf16.mxu0 0
    %658 = vmatpush1.bf16.msra.mxu0 0
    %659 = vmatprep.subr.bf16.mxu0 0
    %660 = vmatpush1.bf16.msra.mxu0 0
    %661 = vmatprep.subr.bf16.mxu0 0
    %662 = vmatpush1.bf16.msra.mxu0 %v646
    %663 = vmatprep.subr.bf16.mxu0 0
    %664 = vmatpush1.bf16.msra.mxu0 %v645
    %665 = vmatprep.subr.bf16.mxu0 0
    %666 = vmatpush2.bf16.msra.mxu0 0
    %667 = vmatprep.subr.bf16.mxu0 0
    %668 = vmatpush2.bf16.msra.mxu0 0
    %669 = vmatprep.subr.bf16.mxu0 0
    %670 = vmatpush2.bf16.msra.mxu0 0
    %671 = vmatprep.subr.bf16.mxu0 0
    %672 = vmatpush2.bf16.msra.mxu0 0
    %673 = vmatprep.subr.bf16.mxu0 0
    %674 = vmatpush2.bf16.msra.mxu0 0
    %675 = vmatprep.subr.bf16.mxu0 0
    %676 = vmatpush2.bf16.msra.mxu0 0
    %677 = vmatprep.subr.bf16.mxu0 0
    %678 = vmatpush2.bf16.msra.mxu0 0
    %679 = vmatprep.subr.bf16.mxu0 0
    %680 = vmatpush2.bf16.msra.mxu0 0
    %681 = vmatprep.mubr.bf16.mxu0 0
    %682 = vmatmul.mubr.bf16.gmra.mxu0 %v541
    %v683 = vpop.f32.mrf.mxu0
    %v684 = vadd.f32 0.0, %v683
    %v685 = vpop.f32.mrf.mxu0
    %v686 = vpop.f32.mrf.mxu0
    %v687 = vadd.f32 0.0, %v686
    %v688 = vpop.f32.mrf.mxu0
    %689 = vdwg.mxu0
    %v694 = vunpack.c.l.b16 %v524
    %v695 = vunpack.c.l.b16 %v525
    %v696 = vunpack.c.l.b16 %v526
    %v697 = vunpack.c.l.b16 %v527
    %v698 = vpack.c.b16 %v695, %v694
    %v699 = vpack.c.b16 %v697, %v696
    %702 = vmatprep.subr.bf16.mxu0 0
    %703 = vmatpush1.bf16.msra.mxu0 0
    %704 = vmatprep.subr.bf16.mxu0 0
    %705 = vmatpush1.bf16.msra.mxu0 0
    %706 = vmatprep.subr.bf16.mxu0 0
    %707 = vmatpush1.bf16.msra.mxu0 0
    %708 = vmatprep.subr.bf16.mxu0 0
    %709 = vmatpush1.bf16.msra.mxu0 0
    %710 = vmatprep.subr.bf16.mxu0 0
    %711 = vmatpush1.bf16.msra.mxu0 0
    %712 = vmatprep.subr.bf16.mxu0 0
    %713 = vmatpush1.bf16.msra.mxu0 0
    %714 = vmatprep.subr.bf16.mxu0 0
    %715 = vmatpush1.bf16.msra.mxu0 %v699
    %716 = vmatprep.subr.bf16.mxu0 0
    %717 = vmatpush1.bf16.msra.mxu0 %v698
    %718 = vmatprep.subr.bf16.mxu0 0
    %719 = vmatpush2.bf16.msra.mxu0 0
    %720 = vmatprep.subr.bf16.mxu0 0
    %721 = vmatpush2.bf16.msra.mxu0 0
    %722 = vmatprep.subr.bf16.mxu0 0
    %723 = vmatpush2.bf16.msra.mxu0 0
    %724 = vmatprep.subr.bf16.mxu0 0
    %725 = vmatpush2.bf16.msra.mxu0 0
    %726 = vmatprep.subr.bf16.mxu0 0
    %727 = vmatpush2.bf16.msra.mxu0 0
    %728 = vmatprep.subr.bf16.mxu0 0
    %729 = vmatpush2.bf16.msra.mxu0 0
    %730 = vmatprep.subr.bf16.mxu0 0
    %731 = vmatpush2.bf16.msra.mxu0 0
    %732 = vmatprep.subr.bf16.mxu0 0
    %733 = vmatpush2.bf16.msra.mxu0 0
    %734 = vmatprep.mubr.bf16.mxu0 0
    %735 = vmatmul.mubr.bf16.gmra.mxu0 %v541
    %v736 = vpop.f32.mrf.mxu0
    %v737 = vadd.f32 0.0, %v736
    %v738 = vpop.f32.mrf.mxu0
    %v739 = vpop.f32.mrf.mxu0
    %v740 = vadd.f32 0.0, %v739
    %v741 = vpop.f32.mrf.mxu0
    %742 = vdwg.mxu0
    %v743 = vpack.c.bf16 %v116, %v116
    %v744 = vpack.c.bf16 %v119, %v119
    %v745 = vpack.c.bf16 %v169, %v169
    %v746 = vpack.c.bf16 %v172, %v172
    %v747 = vpack.c.bf16 %v222, %v222
    %v748 = vpack.c.bf16 %v225, %v225
    %v749 = vpack.c.bf16 %v275, %v275
    %v750 = vpack.c.bf16 %v278, %v278
    %v751 = vpack.c.bf16 %v347, %v347
    %v752 = vpack.c.bf16 %v350, %v350
    %v753 = vpack.c.bf16 %v400, %v400
    %v754 = vpack.c.bf16 %v403, %v403
    %v755 = vpack.c.bf16 %v453, %v453
    %v756 = vpack.c.bf16 %v456, %v456
    %v757 = vpack.c.bf16 %v506, %v506
    %v758 = vpack.c.bf16 %v509, %v509
    %v759 = vpack.c.bf16 %v578, %v578
    %v760 = vpack.c.bf16 %v581, %v581
    %v761 = vpack.c.bf16 %v631, %v631
    %v762 = vpack.c.bf16 %v634, %v634
    %v763 = vpack.c.bf16 %v684, %v684
    %v764 = vpack.c.bf16 %v687, %v687
    %v765 = vpack.c.bf16 %v737, %v737
    %v766 = vpack.c.bf16 %v740, %v740
    %vm767 = vcmask 64512
    %v769 = vsel %vm767, %v743, 0
    %v772 = vsel %vm767, %v751, 0
    %774 = vmatprep.subr.bf16.mxu0 0
    %775 = vmatpush1.bf16.xpose.msra.mxu0 0
    %776 = vmatprep.subr.bf16.mxu0 0
    %777 = vmatpush1.bf16.xpose.msra.mxu0 0
    %778 = vmatprep.subr.bf16.mxu0 0
    %779 = vmatpush1.bf16.xpose.msra.mxu0 0
    %780 = vmatprep.subr.bf16.mxu0 0
    %781 = vmatpush1.bf16.xpose.msra.mxu0 0
    %782 = vmatprep.subr.bf16.mxu0 0
    %783 = vmatpush1.bf16.xpose.msra.mxu0 0
    %784 = vmatprep.subr.bf16.mxu0 0
    %785 = vmatpush1.bf16.xpose.msra.mxu0 0
    %786 = vmatprep.subr.bf16.mxu0 0
    %787 = vmatpush1.bf16.xpose.msra.mxu0 0
    %788 = vmatprep.subr.bf16.mxu0 0
    %789 = vmatpush1.bf16.xpose.msra.mxu0 %v772
    %790 = vmatprep.subr.bf16.mxu0 0
    %791 = vmatpush2.bf16.xpose.msra.mxu0 0
    %792 = vmatprep.subr.bf16.mxu0 0
    %793 = vmatpush2.bf16.xpose.msra.mxu0 0
    %794 = vmatprep.subr.bf16.mxu0 0
    %795 = vmatpush2.bf16.xpose.msra.mxu0 0
    %796 = vmatprep.subr.bf16.mxu0 0
    %797 = vmatpush2.bf16.xpose.msra.mxu0 0
    %798 = vmatprep.subr.bf16.mxu0 0
    %799 = vmatpush2.bf16.xpose.msra.mxu0 0
    %800 = vmatprep.subr.bf16.mxu0 0
    %801 = vmatpush2.bf16.xpose.msra.mxu0 0
    %802 = vmatprep.subr.bf16.mxu0 0
    %803 = vmatpush2.bf16.xpose.msra.mxu0 0
    %804 = vmatprep.subr.bf16.mxu0 0
    %805 = vmatpush2.bf16.xpose.msra.mxu0 0
    %806 = vmatprep.mubr.bf16.mxu0 0
    %807 = vmatmul.mubr.bf16.gmra.mxu0 %v769
    %v808 = vpop.f32.mrf.mxu0
    %v809 = vadd.f32 0.0, %v808
    %v810 = vpop.f32.mrf.mxu0
    %v811 = vpop.f32.mrf.mxu0
    %v812 = vpop.f32.mrf.mxu0
    %813 = vdwg.mxu0
    %v815 = vsel %vm767, %v744, 0
    %v818 = vsel %vm767, %v752, 0
    %820 = vmatprep.subr.bf16.mxu0 0
    %821 = vmatpush1.bf16.xpose.msra.mxu0 0
    %822 = vmatprep.subr.bf16.mxu0 0
    %823 = vmatpush1.bf16.xpose.msra.mxu0 0
    %824 = vmatprep.subr.bf16.mxu0 0
    %825 = vmatpush1.bf16.xpose.msra.mxu0 0
    %826 = vmatprep.subr.bf16.mxu0 0
    %827 = vmatpush1.bf16.xpose.msra.mxu0 0
    %828 = vmatprep.subr.bf16.mxu0 0
    %829 = vmatpush1.bf16.xpose.msra.mxu0 0
    %830 = vmatprep.subr.bf16.mxu0 0
    %831 = vmatpush1.bf16.xpose.msra.mxu0 0
    %832 = vmatprep.subr.bf16.mxu0 0
    %833 = vmatpush1.bf16.xpose.msra.mxu0 0
    %834 = vmatprep.subr.bf16.mxu0 0
    %835 = vmatpush1.bf16.xpose.msra.mxu0 %v818
    %836 = vmatprep.subr.bf16.mxu0 0
    %837 = vmatpush2.bf16.xpose.msra.mxu0 0
    %838 = vmatprep.subr.bf16.mxu0 0
    %839 = vmatpush2.bf16.xpose.msra.mxu0 0
    %840 = vmatprep.subr.bf16.mxu0 0
    %841 = vmatpush2.bf16.xpose.msra.mxu0 0
    %842 = vmatprep.subr.bf16.mxu0 0
    %843 = vmatpush2.bf16.xpose.msra.mxu0 0
    %844 = vmatprep.subr.bf16.mxu0 0
    %845 = vmatpush2.bf16.xpose.msra.mxu0 0
    %846 = vmatprep.subr.bf16.mxu0 0
    %847 = vmatpush2.bf16.xpose.msra.mxu0 0
    %848 = vmatprep.subr.bf16.mxu0 0
    %849 = vmatpush2.bf16.xpose.msra.mxu0 0
    %850 = vmatprep.subr.bf16.mxu0 0
    %851 = vmatpush2.bf16.xpose.msra.mxu0 0
    %852 = vmatprep.mubr.bf16.mxu0 0
    %853 = vmatmul.mubr.bf16.gmra.mxu0 %v815
    %v854 = vpop.f32.mrf.mxu0
    %v855 = vadd.f32 0.0, %v854
    %v856 = vpop.f32.mrf.mxu0
    %v857 = vpop.f32.mrf.mxu0
    %v858 = vpop.f32.mrf.mxu0
    %859 = vdwg.mxu0
    %v861 = vsel %vm767, %v745, 0
    %v864 = vsel %vm767, %v753, 0
    %866 = vmatprep.subr.bf16.mxu0 0
    %867 = vmatpush1.bf16.xpose.msra.mxu0 0
    %868 = vmatprep.subr.bf16.mxu0 0
    %869 = vmatpush1.bf16.xpose.msra.mxu0 0
    %870 = vmatprep.subr.bf16.mxu0 0
    %871 = vmatpush1.bf16.xpose.msra.mxu0 0
    %872 = vmatprep.subr.bf16.mxu0 0
    %873 = vmatpush1.bf16.xpose.msra.mxu0 0
    %874 = vmatprep.subr.bf16.mxu0 0
    %875 = vmatpush1.bf16.xpose.msra.mxu0 0
    %876 = vmatprep.subr.bf16.mxu0 0
    %877 = vmatpush1.bf16.xpose.msra.mxu0 0
    %878 = vmatprep.subr.bf16.mxu0 0
    %879 = vmatpush1.bf16.xpose.msra.mxu0 0
    %880 = vmatprep.subr.bf16.mxu0 0
    %881 = vmatpush1.bf16.xpose.msra.mxu0 %v864
    %882 = vmatprep.subr.bf16.mxu0 0
    %883 = vmatpush2.bf16.xpose.msra.mxu0 0
    %884 = vmatprep.subr.bf16.mxu0 0
    %885 = vmatpush2.bf16.xpose.msra.mxu0 0
    %886 = vmatprep.subr.bf16.mxu0 0
    %887 = vmatpush2.bf16.xpose.msra.mxu0 0
    %888 = vmatprep.subr.bf16.mxu0 0
    %889 = vmatpush2.bf16.xpose.msra.mxu0 0
    %890 = vmatprep.subr.bf16.mxu0 0
    %891 = vmatpush2.bf16.xpose.msra.mxu0 0
    %892 = vmatprep.subr.bf16.mxu0 0
    %893 = vmatpush2.bf16.xpose.msra.mxu0 0
    %894 = vmatprep.subr.bf16.mxu0 0
    %895 = vmatpush2.bf16.xpose.msra.mxu0 0
    %896 = vmatprep.subr.bf16.mxu0 0
    %897 = vmatpush2.bf16.xpose.msra.mxu0 0
    %898 = vmatprep.mubr.bf16.mxu0 0
    %899 = vmatmul.mubr.bf16.gmra.mxu0 %v861
    %v900 = vpop.f32.mrf.mxu0
    %v901 = vadd.f32 0.0, %v900
    %v902 = vpop.f32.mrf.mxu0
    %v903 = vpop.f32.mrf.mxu0
    %v904 = vpop.f32.mrf.mxu0
    %905 = vdwg.mxu0
    %v907 = vsel %vm767, %v746, 0
    %v910 = vsel %vm767, %v754, 0
    %912 = vmatprep.subr.bf16.mxu0 0
    %913 = vmatpush1.bf16.xpose.msra.mxu0 0
    %914 = vmatprep.subr.bf16.mxu0 0
    %915 = vmatpush1.bf16.xpose.msra.mxu0 0
    %916 = vmatprep.subr.bf16.mxu0 0
    %917 = vmatpush1.bf16.xpose.msra.mxu0 0
    %918 = vmatprep.subr.bf16.mxu0 0
    %919 = vmatpush1.bf16.xpose.msra.mxu0 0
    %920 = vmatprep.subr.bf16.mxu0 0
    %921 = vmatpush1.bf16.xpose.msra.mxu0 0
    %922 = vmatprep.subr.bf16.mxu0 0
    %923 = vmatpush1.bf16.xpose.msra.mxu0 0
    %924 = vmatprep.subr.bf16.mxu0 0
    %925 = vmatpush1.bf16.xpose.msra.mxu0 0
    %926 = vmatprep.subr.bf16.mxu0 0
    %927 = vmatpush1.bf16.xpose.msra.mxu0 %v910
    %928 = vmatprep.subr.bf16.mxu0 0
    %929 = vmatpush2.bf16.xpose.msra.mxu0 0
    %930 = vmatprep.subr.bf16.mxu0 0
    %931 = vmatpush2.bf16.xpose.msra.mxu0 0
    %932 = vmatprep.subr.bf16.mxu0 0
    %933 = vmatpush2.bf16.xpose.msra.mxu0 0
    %934 = vmatprep.subr.bf16.mxu0 0
    %935 = vmatpush2.bf16.xpose.msra.mxu0 0
    %936 = vmatprep.subr.bf16.mxu0 0
    %937 = vmatpush2.bf16.xpose.msra.mxu0 0
    %938 = vmatprep.subr.bf16.mxu0 0
    %939 = vmatpush2.bf16.xpose.msra.mxu0 0
    %940 = vmatprep.subr.bf16.mxu0 0
    %941 = vmatpush2.bf16.xpose.msra.mxu0 0
    %942 = vmatprep.subr.bf16.mxu0 0
    %943 = vmatpush2.bf16.xpose.msra.mxu0 0
    %944 = vmatprep.mubr.bf16.mxu0 0
    %945 = vmatmul.mubr.bf16.gmra.mxu0 %v907
    %v946 = vpop.f32.mrf.mxu0
    %v947 = vadd.f32 0.0, %v946
    %v948 = vpop.f32.mrf.mxu0
    %v949 = vpop.f32.mrf.mxu0
    %v950 = vpop.f32.mrf.mxu0
    %951 = vdwg.mxu0
    %v953 = vsel %vm767, %v747, 0
    %v956 = vsel %vm767, %v755, 0
    %958 = vmatprep.subr.bf16.mxu0 0
    %959 = vmatpush1.bf16.xpose.msra.mxu0 0
    %960 = vmatprep.subr.bf16.mxu0 0
    %961 = vmatpush1.bf16.xpose.msra.mxu0 0
    %962 = vmatprep.subr.bf16.mxu0 0
    %963 = vmatpush1.bf16.xpose.msra.mxu0 0
    %964 = vmatprep.subr.bf16.mxu0 0
    %965 = vmatpush1.bf16.xpose.msra.mxu0 0
    %966 = vmatprep.subr.bf16.mxu0 0
    %967 = vmatpush1.bf16.xpose.msra.mxu0 0
    %968 = vmatprep.subr.bf16.mxu0 0
    %969 = vmatpush1.bf16.xpose.msra.mxu0 0
    %970 = vmatprep.subr.bf16.mxu0 0
    %971 = vmatpush1.bf16.xpose.msra.mxu0 0
    %972 = vmatprep.subr.bf16.mxu0 0
    %973 = vmatpush1.bf16.xpose.msra.mxu0 %v956
    %974 = vmatprep.subr.bf16.mxu0 0
    %975 = vmatpush2.bf16.xpose.msra.mxu0 0
    %976 = vmatprep.subr.bf16.mxu0 0
    %977 = vmatpush2.bf16.xpose.msra.mxu0 0
    %978 = vmatprep.subr.bf16.mxu0 0
    %979 = vmatpush2.bf16.xpose.msra.mxu0 0
    %980 = vmatprep.subr.bf16.mxu0 0
    %981 = vmatpush2.bf16.xpose.msra.mxu0 0
    %982 = vmatprep.subr.bf16.mxu0 0
    %983 = vmatpush2.bf16.xpose.msra.mxu0 0
    %984 = vmatprep.subr.bf16.mxu0 0
    %985 = vmatpush2.bf16.xpose.msra.mxu0 0
    %986 = vmatprep.subr.bf16.mxu0 0
    %987 = vmatpush2.bf16.xpose.msra.mxu0 0
    %988 = vmatprep.subr.bf16.mxu0 0
    %989 = vmatpush2.bf16.xpose.msra.mxu0 0
    %990 = vmatprep.mubr.bf16.mxu0 0
    %991 = vmatmul.mubr.bf16.gmra.mxu0 %v953
    %v992 = vpop.f32.mrf.mxu0
    %v993 = vadd.f32 0.0, %v992
    %v994 = vpop.f32.mrf.mxu0
    %v995 = vpop.f32.mrf.mxu0
    %v996 = vpop.f32.mrf.mxu0
    %997 = vdwg.mxu0
    %v999 = vsel %vm767, %v748, 0
    %v1002 = vsel %vm767, %v756, 0
    %1004 = vmatprep.subr.bf16.mxu0 0
    %1005 = vmatpush1.bf16.xpose.msra.mxu0 0
    %1006 = vmatprep.subr.bf16.mxu0 0
    %1007 = vmatpush1.bf16.xpose.msra.mxu0 0
    %1008 = vmatprep.subr.bf16.mxu0 0
    %1009 = vmatpush1.bf16.xpose.msra.mxu0 0
    %1010 = vmatprep.subr.bf16.mxu0 0
    %1011 = vmatpush1.bf16.xpose.msra.mxu0 0
    %1012 = vmatprep.subr.bf16.mxu0 0
    %1013 = vmatpush1.bf16.xpose.msra.mxu0 0
    %1014 = vmatprep.subr.bf16.mxu0 0
    %1015 = vmatpush1.bf16.xpose.msra.mxu0 0
    %1016 = vmatprep.subr.bf16.mxu0 0
    %1017 = vmatpush1.bf16.xpose.msra.mxu0 0
    %1018 = vmatprep.subr.bf16.mxu0 0
    %1019 = vmatpush1.bf16.xpose.msra.mxu0 %v1002
    %1020 = vmatprep.subr.bf16.mxu0 0
    %1021 = vmatpush2.bf16.xpose.msra.mxu0 0
    %1022 = vmatprep.subr.bf16.mxu0 0
    %1023 = vmatpush2.bf16.xpose.msra.mxu0 0
    %1024 = vmatprep.subr.bf16.mxu0 0
    %1025 = vmatpush2.bf16.xpose.msra.mxu0 0
    %1026 = vmatprep.subr.bf16.mxu0 0
    %1027 = vmatpush2.bf16.xpose.msra.mxu0 0
    %1028 = vmatprep.subr.bf16.mxu0 0
    %1029 = vmatpush2.bf16.xpose.msra.mxu0 0
    %1030 = vmatprep.subr.bf16.mxu0 0
    %1031 = vmatpush2.bf16.xpose.msra.mxu0 0
    %1032 = vmatprep.subr.bf16.mxu0 0
    %1033 = vmatpush2.bf16.xpose.msra.mxu0 0
    %1034 = vmatprep.subr.bf16.mxu0 0
    %1035 = vmatpush2.bf16.xpose.msra.mxu0 0
    %1036 = vmatprep.mubr.bf16.mxu0 0
    %1037 = vmatmul.mubr.bf16.gmra.mxu0 %v999
    %v1038 = vpop.f32.mrf.mxu0
    %v1039 = vadd.f32 0.0, %v1038
    %v1040 = vpop.f32.mrf.mxu0
    %v1041 = vpop.f32.mrf.mxu0
    %v1042 = vpop.f32.mrf.mxu0
    %1043 = vdwg.mxu0
    %v1045 = vsel %vm767, %v749, 0
    %v1048 = vsel %vm767, %v757, 0
    %1050 = vmatprep.subr.bf16.mxu0 0
    %1051 = vmatpush1.bf16.xpose.msra.mxu0 0
    %1052 = vmatprep.subr.bf16.mxu0 0
    %1053 = vmatpush1.bf16.xpose.msra.mxu0 0
    %1054 = vmatprep.subr.bf16.mxu0 0
    %1055 = vmatpush1.bf16.xpose.msra.mxu0 0
    %1056 = vmatprep.subr.bf16.mxu0 0
    %1057 = vmatpush1.bf16.xpose.msra.mxu0 0
    %1058 = vmatprep.subr.bf16.mxu0 0
    %1059 = vmatpush1.bf16.xpose.msra.mxu0 0
    %1060 = vmatprep.subr.bf16.mxu0 0
    %1061 = vmatpush1.bf16.xpose.msra.mxu0 0
    %1062 = vmatprep.subr.bf16.mxu0 0
    %1063 = vmatpush1.bf16.xpose.msra.mxu0 0
    %1064 = vmatprep.subr.bf16.mxu0 0
    %1065 = vmatpush1.bf16.xpose.msra.mxu0 %v1048
    %1066 = vmatprep.subr.bf16.mxu0 0
    %1067 = vmatpush2.bf16.xpose.msra.mxu0 0
    %1068 = vmatprep.subr.bf16.mxu0 0
    %1069 = vmatpush2.bf16.xpose.msra.mxu0 0
    %1070 = vmatprep.subr.bf16.mxu0 0
    %1071 = vmatpush2.bf16.xpose.msra.mxu0 0
    %1072 = vmatprep.subr.bf16.mxu0 0
    %1073 = vmatpush2.bf16.xpose.msra.mxu0 0
    %1074 = vmatprep.subr.bf16.mxu0 0
    %1075 = vmatpush2.bf16.xpose.msra.mxu0 0
    %1076 = vmatprep.subr.bf16.mxu0 0
    %1077 = vmatpush2.bf16.xpose.msra.mxu0 0
    %1078 = vmatprep.subr.bf16.mxu0 0
    %1079 = vmatpush2.bf16.xpose.msra.mxu0 0
    %1080 = vmatprep.subr.bf16.mxu0 0
    %1081 = vmatpush2.bf16.xpose.msra.mxu0 0
    %1082 = vmatprep.mubr.bf16.mxu0 0
    %1083 = vmatmul.mubr.bf16.gmra.mxu0 %v1045
    %v1084 = vpop.f32.mrf.mxu0
    %v1085 = vadd.f32 0.0, %v1084
    %v1086 = vpop.f32.mrf.mxu0
    %v1087 = vpop.f32.mrf.mxu0
    %v1088 = vpop.f32.mrf.mxu0
    %1089 = vdwg.mxu0
    %v1091 = vsel %vm767, %v750, 0
    %v1094 = vsel %vm767, %v758, 0
    %1096 = vmatprep.subr.bf16.mxu0 0
    %1097 = vmatpush1.bf16.xpose.msra.mxu0 0
    %1098 = vmatprep.subr.bf16.mxu0 0
    %1099 = vmatpush1.bf16.xpose.msra.mxu0 0
    %1100 = vmatprep.subr.bf16.mxu0 0
    %1101 = vmatpush1.bf16.xpose.msra.mxu0 0
    %1102 = vmatprep.subr.bf16.mxu0 0
    %1103 = vmatpush1.bf16.xpose.msra.mxu0 0
    %1104 = vmatprep.subr.bf16.mxu0 0
    %1105 = vmatpush1.bf16.xpose.msra.mxu0 0
    %1106 = vmatprep.subr.bf16.mxu0 0
    %1107 = vmatpush1.bf16.xpose.msra.mxu0 0
    %1108 = vmatprep.subr.bf16.mxu0 0
    %1109 = vmatpush1.bf16.xpose.msra.mxu0 0
    %1110 = vmatprep.subr.bf16.mxu0 0
    %1111 = vmatpush1.bf16.xpose.msra.mxu0 %v1094
    %1112 = vmatprep.subr.bf16.mxu0 0
    %1113 = vmatpush2.bf16.xpose.msra.mxu0 0
    %1114 = vmatprep.subr.bf16.mxu0 0
    %1115 = vmatpush2.bf16.xpose.msra.mxu0 0
    %1116 = vmatprep.subr.bf16.mxu0 0
    %1117 = vmatpush2.bf16.xpose.msra.mxu0 0
    %1118 = vmatprep.subr.bf16.mxu0 0
    %1119 = vmatpush2.bf16.xpose.msra.mxu0 0
    %1120 = vmatprep.subr.bf16.mxu0 0
    %1121 = vmatpush2.bf16.xpose.msra.mxu0 0
    %1122 = vmatprep.subr.bf16.mxu0 0
    %1123 = vmatpush2.bf16.xpose.msra.mxu0 0
    %1124 = vmatprep.subr.bf16.mxu0 0
    %1125 = vmatpush2.bf16.xpose.msra.mxu0 0
    %1126 = vmatprep.subr.bf16.mxu0 0
    %1127 = vmatpush2.bf16.xpose.msra.mxu0 0
    %1128 = vmatprep.mubr.bf16.mxu0 0
    %1129 = vmatmul.mubr.bf16.gmra.mxu0 %v1091
    %v1130 = vpop.f32.mrf.mxu0
    %v1131 = vadd.f32 0.0, %v1130
    %v1132 = vpop.f32.mrf.mxu0
    %v1133 = vpop.f32.mrf.mxu0
    %v1134 = vpop.f32.mrf.mxu0
    %1135 = vdwg.mxu0
    %v1136 = vld [vmem:[%s3] sm:$0xff]
    %v1137 = vld [vmem:[%s3 + $0x8] sm:$0xff]
    %v1138 = vld [vmem:[%s3 + $0x10] sm:$0xff]
    %v1139 = vld [vmem:[%s3 + $0x18] sm:$0xff]
    %v1140 = vld [vmem:[%s3 + $0x20] sm:$0xff]
    %v1141 = vld [vmem:[%s3 + $0x28] sm:$0xff]
    %v1142 = vld [vmem:[%s3 + $0x30] sm:$0xff]
    %v1143 = vld [vmem:[%s3 + $0x38] sm:$0xff]
    %v1144 = vmul.f32 %v809, %v1136
    %v1145 = vmul.f32 %v855, %v1137
    %v1146 = vmul.f32 %v901, %v1138
    %v1147 = vmul.f32 %v947, %v1139
    %v1148 = vmul.f32 %v993, %v1140
    %v1149 = vmul.f32 %v1039, %v1141
    %v1150 = vmul.f32 %v1085, %v1142
    %v1151 = vmul.f32 %v1131, %v1143
    %v1152 = vld [vmem:[%s4] sm:$0x3]
    %vm1153 = vcmp.eq.s32.totalorder %v1152, 0
    %v1154 = vsel %vm1153, 1, 0
    %v1156 = vunpack.c.l.s4 1966171168
    %v1157 = vunpack.c.0.s8 %v1156
    %v1158 = vlaneseq
    %v1159 = vshrl.u32 %v1158, 7
    %v1160 = vsub.s32 %v1157, %v1159
    %v1161 = vrot.slane %v1154, %v1160
    %v1162 = vcombine.high %v1161, %v1161
    %v1164 = vunpack.c.l.s4 1966171168
    %v1165 = vunpack.c.0.s8 %v1164
    %v1166 = vlaneseq
    %v1167 = vshrl.u32 %v1166, 7
    %v1168 = vsub.s32 %v1165, %v1167
    %v1169 = vrot.slane %v1161, %v1168
    %v1171 = vunpack.c.l.s4 1966171168
    %v1172 = vunpack.c.0.s8 %v1171
    %v1173 = vlaneseq
    %v1174 = vshrl.u32 %v1173, 7
    %v1175 = vsub.s32 %v1172, %v1174
    %v1176 = vrot.slane %v1162, %v1175
    %vm1177 = vcmp.ne.s32.totalorder %v1169, 0
    %vm1178 = vcmp.ne.s32.totalorder %v1176, 0
    %v1179 = vsel %vm1177, 1, 0
    %v1180 = vsel %vm1178, 1, 0
    %v1181 = vlaneseq
    %v1182 = vshrl.u32 %v1181, 7
    %v1183 = vsub.s32 0, %v1182
    %v1184 = vrot.slane %v1179, %v1183
    %v1185 = vlaneseq
    %v1186 = vshrl.u32 %v1185, 7
    %v1187 = vsub.s32 0, %v1186
    %v1188 = vrot.slane %v1180, %v1187
    %vm1189 = vcmp.eq.s32.totalorder %v1184, 1
    %vm1190 = vcmp.eq.s32.totalorder %v1188, 1
    %v1191 = vsel %vm1189, -1e+09, %v1144
    %v1192 = vsel %vm1190, -1e+09, %v1145
    %v1193 = vsel %vm1189, -1e+09, %v1146
    %v1194 = vsel %vm1190, -1e+09, %v1147
    %v1195 = vsel %vm1189, -1e+09, %v1148
    %v1196 = vsel %vm1190, -1e+09, %v1149
    %v1197 = vsel %vm1189, -1e+09, %v1150
    %v1198 = vsel %vm1190, -1e+09, %v1151
    %v1199 = vsel %vm767, %v1191, -inf
    %1200 = vmax.xlane.f32.xlu0 %v1199
    %v1201 = vpop.xlane.xlu0 %1200
    %v1202 = vsel %vm767, %v1192, -inf
    %1203 = vmax.xlane.f32.xlu0 %v1202
    %v1204 = vpop.xlane.xlu0 %1203
    %v1205 = vsel %vm767, %v1193, -inf
    %1206 = vmax.xlane.f32.xlu0 %v1205
    %v1207 = vpop.xlane.xlu0 %1206
    %v1208 = vsel %vm767, %v1194, -inf
    %1209 = vmax.xlane.f32.xlu0 %v1208
    %v1210 = vpop.xlane.xlu0 %1209
    %v1211 = vsel %vm767, %v1195, -inf
    %1212 = vmax.xlane.f32.xlu0 %v1211
    %v1213 = vpop.xlane.xlu0 %1212
    %v1214 = vsel %vm767, %v1196, -inf
    %1215 = vmax.xlane.f32.xlu0 %v1214
    %v1216 = vpop.xlane.xlu0 %1215
    %v1217 = vsel %vm767, %v1197, -inf
    %1218 = vmax.xlane.f32.xlu0 %v1217
    %v1219 = vpop.xlane.xlu0 %1218
    %v1220 = vsel %vm767, %v1198, -inf
    %1221 = vmax.xlane.f32.xlu0 %v1220
    %v1222 = vpop.xlane.xlu0 %1221
    %v1223 = vsub.f32 %v1191, %v1201
    %v1224 = vsub.f32 %v1192, %v1204
    %v1225 = vsub.f32 %v1193, %v1207
    %v1226 = vsub.f32 %v1194, %v1210
    %v1227 = vsub.f32 %v1195, %v1213
    %v1228 = vsub.f32 %v1196, %v1216
    %v1229 = vsub.f32 %v1197, %v1219
    %v1230 = vsub.f32 %v1198, %v1222
    %v1231 = vmul.f32 %v1223, 1.442695
    %v1232 = vpow.pop %v1231
    %v1233 = vmul.f32 %v1224, 1.442695
    %v1234 = vpow.pop %v1233
    %v1235 = vmul.f32 %v1225, 1.442695
    %v1236 = vpow.pop %v1235
    %v1237 = vmul.f32 %v1226, 1.442695
    %v1238 = vpow.pop %v1237
    %v1239 = vmul.f32 %v1227, 1.442695
    %v1240 = vpow.pop %v1239
    %v1241 = vmul.f32 %v1228, 1.442695
    %v1242 = vpow.pop %v1241
    %v1243 = vmul.f32 %v1229, 1.442695
    %v1244 = vpow.pop %v1243
    %v1245 = vmul.f32 %v1230, 1.442695
    %v1246 = vpow.pop %v1245
    %v1247 = vsel %vm767, %v1232, 0.0
    %1248 = vadd.xlane.f32.xlu0 %v1247
    %v1249 = vpop.xlane.xlu0 %1248
    %v1250 = vsel %vm767, %v1234, 0.0
    %1251 = vadd.xlane.f32.xlu0 %v1250
    %v1252 = vpop.xlane.xlu0 %1251
    %v1253 = vsel %vm767, %v1236, 0.0
    %1254 = vadd.xlane.f32.xlu0 %v1253
    %v1255 = vpop.xlane.xlu0 %1254
    %v1256 = vsel %vm767, %v1238, 0.0
    %1257 = vadd.xlane.f32.xlu0 %v1256
    %v1258 = vpop.xlane.xlu0 %1257
    %v1259 = vsel %vm767, %v1240, 0.0
    %1260 = vadd.xlane.f32.xlu0 %v1259
    %v1261 = vpop.xlane.xlu0 %1260
    %v1262 = vsel %vm767, %v1242, 0.0
    %1263 = vadd.xlane.f32.xlu0 %v1262
    %v1264 = vpop.xlane.xlu0 %1263
    %v1265 = vsel %vm767, %v1244, 0.0
    %1266 = vadd.xlane.f32.xlu0 %v1265
    %v1267 = vpop.xlane.xlu0 %1266
    %v1268 = vsel %vm767, %v1246, 0.0
    %1269 = vadd.xlane.f32.xlu0 %v1268
    %v1270 = vpop.xlane.xlu0 %1269
    %v1271 = vrcp.pop %v1249
    %v1272 = vrcp.pop %v1252
    %v1273 = vrcp.pop %v1255
    %v1274 = vrcp.pop %v1258
    %v1275 = vrcp.pop %v1261
    %v1276 = vrcp.pop %v1264
    %v1277 = vrcp.pop %v1267
    %v1278 = vrcp.pop %v1270
    %v1279 = vmul.f32 %v1232, %v1271
    %v1280 = vmul.f32 %v1234, %v1272
    %v1281 = vmul.f32 %v1236, %v1273
    %v1282 = vmul.f32 %v1238, %v1274
    %v1283 = vmul.f32 %v1240, %v1275
    %v1284 = vmul.f32 %v1242, %v1276
    %v1285 = vmul.f32 %v1244, %v1277
    %v1286 = vmul.f32 %v1246, %v1278
    %v1287 = vpack.c.bf16 %v1279, %v1279
    %v1288 = vpack.c.bf16 %v1280, %v1280
    %v1289 = vpack.c.bf16 %v1281, %v1281
    %v1290 = vpack.c.bf16 %v1282, %v1282
    %v1291 = vpack.c.bf16 %v1283, %v1283
    %v1292 = vpack.c.bf16 %v1284, %v1284
    %v1293 = vpack.c.bf16 %v1285, %v1285
    %v1294 = vpack.c.bf16 %v1286, %v1286
    %v1296 = vsel %vm767, %v1287, 0
    %vm1298 = vcmask 1043456
    %v1300 = vsel %vm1298, %v759, 0
    %1302 = vmatprep.subr.bf16.mxu0 0
    %1303 = vmatpush1.bf16.msra.mxu0 0
    %1304 = vmatprep.subr.bf16.mxu0 0
    %1305 = vmatpush1.bf16.msra.mxu0 0
    %1306 = vmatprep.subr.bf16.mxu0 0
    %1307 = vmatpush1.bf16.msra.mxu0 0
    %1308 = vmatprep.subr.bf16.mxu0 0
    %1309 = vmatpush1.bf16.msra.mxu0 0
    %1310 = vmatprep.subr.bf16.mxu0 0
    %1311 = vmatpush1.bf16.msra.mxu0 0
    %1312 = vmatprep.subr.bf16.mxu0 0
    %1313 = vmatpush1.bf16.msra.mxu0 0
    %1314 = vmatprep.subr.bf16.mxu0 0
    %1315 = vmatpush1.bf16.msra.mxu0 0
    %1316 = vmatprep.subr.bf16.mxu0 0
    %1317 = vmatpush1.bf16.msra.mxu0 %v1300
    %1318 = vmatprep.subr.bf16.mxu0 0
    %1319 = vmatpush2.bf16.msra.mxu0 0
    %1320 = vmatprep.subr.bf16.mxu0 0
    %1321 = vmatpush2.bf16.msra.mxu0 0
    %1322 = vmatprep.subr.bf16.mxu0 0
    %1323 = vmatpush2.bf16.msra.mxu0 0
    %1324 = vmatprep.subr.bf16.mxu0 0
    %1325 = vmatpush2.bf16.msra.mxu0 0
    %1326 = vmatprep.subr.bf16.mxu0 0
    %1327 = vmatpush2.bf16.msra.mxu0 0
    %1328 = vmatprep.subr.bf16.mxu0 0
    %1329 = vmatpush2.bf16.msra.mxu0 0
    %1330 = vmatprep.subr.bf16.mxu0 0
    %1331 = vmatpush2.bf16.msra.mxu0 0
    %1332 = vmatprep.subr.bf16.mxu0 0
    %1333 = vmatpush2.bf16.msra.mxu0 0
    %1334 = vmatprep.mubr.bf16.mxu0 0
    %1335 = vmatmul.mubr.bf16.gmra.mxu0 %v1296
    %v1336 = vpop.f32.mrf.mxu0
    %v1337 = vadd.f32 0.0, %v1336
    %v1338 = vpop.f32.mrf.mxu0
    %v1339 = vpop.f32.mrf.mxu0
    %v1340 = vpop.f32.mrf.mxu0
    %1341 = vdwg.mxu0
    %v1343 = vsel %vm767, %v1288, 0
    %v1346 = vsel %vm1298, %v760, 0
    %1348 = vmatprep.subr.bf16.mxu0 0
    %1349 = vmatpush1.bf16.msra.mxu0 0
    %1350 = vmatprep.subr.bf16.mxu0 0
    %1351 = vmatpush1.bf16.msra.mxu0 0
    %1352 = vmatprep.subr.bf16.mxu0 0
    %1353 = vmatpush1.bf16.msra.mxu0 0
    %1354 = vmatprep.subr.bf16.mxu0 0
    %1355 = vmatpush1.bf16.msra.mxu0 0
    %1356 = vmatprep.subr.bf16.mxu0 0
    %1357 = vmatpush1.bf16.msra.mxu0 0
    %1358 = vmatprep.subr.bf16.mxu0 0
    %1359 = vmatpush1.bf16.msra.mxu0 0
    %1360 = vmatprep.subr.bf16.mxu0 0
    %1361 = vmatpush1.bf16.msra.mxu0 0
    %1362 = vmatprep.subr.bf16.mxu0 0
    %1363 = vmatpush1.bf16.msra.mxu0 %v1346
    %1364 = vmatprep.subr.bf16.mxu0 0
    %1365 = vmatpush2.bf16.msra.mxu0 0
    %1366 = vmatprep.subr.bf16.mxu0 0
    %1367 = vmatpush2.bf16.msra.mxu0 0
    %1368 = vmatprep.subr.bf16.mxu0 0
    %1369 = vmatpush2.bf16.msra.mxu0 0
    %1370 = vmatprep.subr.bf16.mxu0 0
    %1371 = vmatpush2.bf16.msra.mxu0 0
    %1372 = vmatprep.subr.bf16.mxu0 0
    %1373 = vmatpush2.bf16.msra.mxu0 0
    %1374 = vmatprep.subr.bf16.mxu0 0
    %1375 = vmatpush2.bf16.msra.mxu0 0
    %1376 = vmatprep.subr.bf16.mxu0 0
    %1377 = vmatpush2.bf16.msra.mxu0 0
    %1378 = vmatprep.subr.bf16.mxu0 0
    %1379 = vmatpush2.bf16.msra.mxu0 0
    %1380 = vmatprep.mubr.bf16.mxu0 0
    %1381 = vmatmul.mubr.bf16.gmra.mxu0 %v1343
    %v1382 = vpop.f32.mrf.mxu0
    %v1383 = vadd.f32 0.0, %v1382
    %v1384 = vpop.f32.mrf.mxu0
    %v1385 = vpop.f32.mrf.mxu0
    %v1386 = vpop.f32.mrf.mxu0
    %1387 = vdwg.mxu0
    %v1389 = vsel %vm767, %v1289, 0
    %v1392 = vsel %vm1298, %v761, 0
    %1394 = vmatprep.subr.bf16.mxu0 0
    %1395 = vmatpush1.bf16.msra.mxu0 0
    %1396 = vmatprep.subr.bf16.mxu0 0
    %1397 = vmatpush1.bf16.msra.mxu0 0
    %1398 = vmatprep.subr.bf16.mxu0 0
    %1399 = vmatpush1.bf16.msra.mxu0 0
    %1400 = vmatprep.subr.bf16.mxu0 0
    %1401 = vmatpush1.bf16.msra.mxu0 0
    %1402 = vmatprep.subr.bf16.mxu0 0
    %1403 = vmatpush1.bf16.msra.mxu0 0
    %1404 = vmatprep.subr.bf16.mxu0 0
    %1405 = vmatpush1.bf16.msra.mxu0 0
    %1406 = vmatprep.subr.bf16.mxu0 0
    %1407 = vmatpush1.bf16.msra.mxu0 0
    %1408 = vmatprep.subr.bf16.mxu0 0
    %1409 = vmatpush1.bf16.msra.mxu0 %v1392
    %1410 = vmatprep.subr.bf16.mxu0 0
    %1411 = vmatpush2.bf16.msra.mxu0 0
    %1412 = vmatprep.subr.bf16.mxu0 0
    %1413 = vmatpush2.bf16.msra.mxu0 0
    %1414 = vmatprep.subr.bf16.mxu0 0
    %1415 = vmatpush2.bf16.msra.mxu0 0
    %1416 = vmatprep.subr.bf16.mxu0 0
    %1417 = vmatpush2.bf16.msra.mxu0 0
    %1418 = vmatprep.subr.bf16.mxu0 0
    %1419 = vmatpush2.bf16.msra.mxu0 0
    %1420 = vmatprep.subr.bf16.mxu0 0
    %1421 = vmatpush2.bf16.msra.mxu0 0
    %1422 = vmatprep.subr.bf16.mxu0 0
    %1423 = vmatpush2.bf16.msra.mxu0 0
    %1424 = vmatprep.subr.bf16.mxu0 0
    %1425 = vmatpush2.bf16.msra.mxu0 0
    %1426 = vmatprep.mubr.bf16.mxu0 0
    %1427 = vmatmul.mubr.bf16.gmra.mxu0 %v1389
    %v1428 = vpop.f32.mrf.mxu0
    %v1429 = vadd.f32 0.0, %v1428
    %v1430 = vpop.f32.mrf.mxu0
    %v1431 = vpop.f32.mrf.mxu0
    %v1432 = vpop.f32.mrf.mxu0
    %1433 = vdwg.mxu0
    %v1435 = vsel %vm767, %v1290, 0
    %v1438 = vsel %vm1298, %v762, 0
    %1440 = vmatprep.subr.bf16.mxu0 0
    %1441 = vmatpush1.bf16.msra.mxu0 0
    %1442 = vmatprep.subr.bf16.mxu0 0
    %1443 = vmatpush1.bf16.msra.mxu0 0
    %1444 = vmatprep.subr.bf16.mxu0 0
    %1445 = vmatpush1.bf16.msra.mxu0 0
    %1446 = vmatprep.subr.bf16.mxu0 0
    %1447 = vmatpush1.bf16.msra.mxu0 0
    %1448 = vmatprep.subr.bf16.mxu0 0
    %1449 = vmatpush1.bf16.msra.mxu0 0
    %1450 = vmatprep.subr.bf16.mxu0 0
    %1451 = vmatpush1.bf16.msra.mxu0 0
    %1452 = vmatprep.subr.bf16.mxu0 0
    %1453 = vmatpush1.bf16.msra.mxu0 0
    %1454 = vmatprep.subr.bf16.mxu0 0
    %1455 = vmatpush1.bf16.msra.mxu0 %v1438
    %1456 = vmatprep.subr.bf16.mxu0 0
    %1457 = vmatpush2.bf16.msra.mxu0 0
    %1458 = vmatprep.subr.bf16.mxu0 0
    %1459 = vmatpush2.bf16.msra.mxu0 0
    %1460 = vmatprep.subr.bf16.mxu0 0
    %1461 = vmatpush2.bf16.msra.mxu0 0
    %1462 = vmatprep.subr.bf16.mxu0 0
    %1463 = vmatpush2.bf16.msra.mxu0 0
    %1464 = vmatprep.subr.bf16.mxu0 0
    %1465 = vmatpush2.bf16.msra.mxu0 0
    %1466 = vmatprep.subr.bf16.mxu0 0
    %1467 = vmatpush2.bf16.msra.mxu0 0
    %1468 = vmatprep.subr.bf16.mxu0 0
    %1469 = vmatpush2.bf16.msra.mxu0 0
    %1470 = vmatprep.subr.bf16.mxu0 0
    %1471 = vmatpush2.bf16.msra.mxu0 0
    %1472 = vmatprep.mubr.bf16.mxu0 0
    %1473 = vmatmul.mubr.bf16.gmra.mxu0 %v1435
    %v1474 = vpop.f32.mrf.mxu0
    %v1475 = vadd.f32 0.0, %v1474
    %v1476 = vpop.f32.mrf.mxu0
    %v1477 = vpop.f32.mrf.mxu0
    %v1478 = vpop.f32.mrf.mxu0
    %1479 = vdwg.mxu0
    %v1481 = vsel %vm767, %v1291, 0
    %v1484 = vsel %vm1298, %v763, 0
    %1486 = vmatprep.subr.bf16.mxu0 0
    %1487 = vmatpush1.bf16.msra.mxu0 0
    %1488 = vmatprep.subr.bf16.mxu0 0
    %1489 = vmatpush1.bf16.msra.mxu0 0
    %1490 = vmatprep.subr.bf16.mxu0 0
    %1491 = vmatpush1.bf16.msra.mxu0 0
    %1492 = vmatprep.subr.bf16.mxu0 0
    %1493 = vmatpush1.bf16.msra.mxu0 0
    %1494 = vmatprep.subr.bf16.mxu0 0
    %1495 = vmatpush1.bf16.msra.mxu0 0
    %1496 = vmatprep.subr.bf16.mxu0 0
    %1497 = vmatpush1.bf16.msra.mxu0 0
    %1498 = vmatprep.subr.bf16.mxu0 0
    %1499 = vmatpush1.bf16.msra.mxu0 0
    %1500 = vmatprep.subr.bf16.mxu0 0
    %1501 = vmatpush1.bf16.msra.mxu0 %v1484
    %1502 = vmatprep.subr.bf16.mxu0 0
    %1503 = vmatpush2.bf16.msra.mxu0 0
    %1504 = vmatprep.subr.bf16.mxu0 0
    %1505 = vmatpush2.bf16.msra.mxu0 0
    %1506 = vmatprep.subr.bf16.mxu0 0
    %1507 = vmatpush2.bf16.msra.mxu0 0
    %1508 = vmatprep.subr.bf16.mxu0 0
    %1509 = vmatpush2.bf16.msra.mxu0 0
    %1510 = vmatprep.subr.bf16.mxu0 0
    %1511 = vmatpush2.bf16.msra.mxu0 0
    %1512 = vmatprep.subr.bf16.mxu0 0
    %1513 = vmatpush2.bf16.msra.mxu0 0
    %1514 = vmatprep.subr.bf16.mxu0 0
    %1515 = vmatpush2.bf16.msra.mxu0 0
    %1516 = vmatprep.subr.bf16.mxu0 0
    %1517 = vmatpush2.bf16.msra.mxu0 0
    %1518 = vmatprep.mubr.bf16.mxu0 0
    %1519 = vmatmul.mubr.bf16.gmra.mxu0 %v1481
    %v1520 = vpop.f32.mrf.mxu0
    %v1521 = vadd.f32 0.0, %v1520
    %v1522 = vpop.f32.mrf.mxu0
    %v1523 = vpop.f32.mrf.mxu0
    %v1524 = vpop.f32.mrf.mxu0
    %1525 = vdwg.mxu0
    %v1527 = vsel %vm767, %v1292, 0
    %v1530 = vsel %vm1298, %v764, 0
    %1532 = vmatprep.subr.bf16.mxu0 0
    %1533 = vmatpush1.bf16.msra.mxu0 0
    %1534 = vmatprep.subr.bf16.mxu0 0
    %1535 = vmatpush1.bf16.msra.mxu0 0
    %1536 = vmatprep.subr.bf16.mxu0 0
    %1537 = vmatpush1.bf16.msra.mxu0 0
    %1538 = vmatprep.subr.bf16.mxu0 0
    %1539 = vmatpush1.bf16.msra.mxu0 0
    %1540 = vmatprep.subr.bf16.mxu0 0
    %1541 = vmatpush1.bf16.msra.mxu0 0
    %1542 = vmatprep.subr.bf16.mxu0 0
    %1543 = vmatpush1.bf16.msra.mxu0 0
    %1544 = vmatprep.subr.bf16.mxu0 0
    %1545 = vmatpush1.bf16.msra.mxu0 0
    %1546 = vmatprep.subr.bf16.mxu0 0
    %1547 = vmatpush1.bf16.msra.mxu0 %v1530
    %1548 = vmatprep.subr.bf16.mxu0 0
    %1549 = vmatpush2.bf16.msra.mxu0 0
    %1550 = vmatprep.subr.bf16.mxu0 0
    %1551 = vmatpush2.bf16.msra.mxu0 0
    %1552 = vmatprep.subr.bf16.mxu0 0
    %1553 = vmatpush2.bf16.msra.mxu0 0
    %1554 = vmatprep.subr.bf16.mxu0 0
    %1555 = vmatpush2.bf16.msra.mxu0 0
    %1556 = vmatprep.subr.bf16.mxu0 0
    %1557 = vmatpush2.bf16.msra.mxu0 0
    %1558 = vmatprep.subr.bf16.mxu0 0
    %1559 = vmatpush2.bf16.msra.mxu0 0
    %1560 = vmatprep.subr.bf16.mxu0 0
    %1561 = vmatpush2.bf16.msra.mxu0 0
    %1562 = vmatprep.subr.bf16.mxu0 0
    %1563 = vmatpush2.bf16.msra.mxu0 0
    %1564 = vmatprep.mubr.bf16.mxu0 0
    %1565 = vmatmul.mubr.bf16.gmra.mxu0 %v1527
    %v1566 = vpop.f32.mrf.mxu0
    %v1567 = vadd.f32 0.0, %v1566
    %v1568 = vpop.f32.mrf.mxu0
    %v1569 = vpop.f32.mrf.mxu0
    %v1570 = vpop.f32.mrf.mxu0
    %1571 = vdwg.mxu0
    %v1573 = vsel %vm767, %v1293, 0
    %v1576 = vsel %vm1298, %v765, 0
    %1578 = vmatprep.subr.bf16.mxu0 0
    %1579 = vmatpush1.bf16.msra.mxu0 0
    %1580 = vmatprep.subr.bf16.mxu0 0
    %1581 = vmatpush1.bf16.msra.mxu0 0
    %1582 = vmatprep.subr.bf16.mxu0 0
    %1583 = vmatpush1.bf16.msra.mxu0 0
    %1584 = vmatprep.subr.bf16.mxu0 0
    %1585 = vmatpush1.bf16.msra.mxu0 0
    %1586 = vmatprep.subr.bf16.mxu0 0
    %1587 = vmatpush1.bf16.msra.mxu0 0
    %1588 = vmatprep.subr.bf16.mxu0 0
    %1589 = vmatpush1.bf16.msra.mxu0 0
    %1590 = vmatprep.subr.bf16.mxu0 0
    %1591 = vmatpush1.bf16.msra.mxu0 0
    %1592 = vmatprep.subr.bf16.mxu0 0
    %1593 = vmatpush1.bf16.msra.mxu0 %v1576
    %1594 = vmatprep.subr.bf16.mxu0 0
    %1595 = vmatpush2.bf16.msra.mxu0 0
    %1596 = vmatprep.subr.bf16.mxu0 0
    %1597 = vmatpush2.bf16.msra.mxu0 0
    %1598 = vmatprep.subr.bf16.mxu0 0
    %1599 = vmatpush2.bf16.msra.mxu0 0
    %1600 = vmatprep.subr.bf16.mxu0 0
    %1601 = vmatpush2.bf16.msra.mxu0 0
    %1602 = vmatprep.subr.bf16.mxu0 0
    %1603 = vmatpush2.bf16.msra.mxu0 0
    %1604 = vmatprep.subr.bf16.mxu0 0
    %1605 = vmatpush2.bf16.msra.mxu0 0
    %1606 = vmatprep.subr.bf16.mxu0 0
    %1607 = vmatpush2.bf16.msra.mxu0 0
    %1608 = vmatprep.subr.bf16.mxu0 0
    %1609 = vmatpush2.bf16.msra.mxu0 0
    %1610 = vmatprep.mubr.bf16.mxu0 0
    %1611 = vmatmul.mubr.bf16.gmra.mxu0 %v1573
    %v1612 = vpop.f32.mrf.mxu0
    %v1613 = vadd.f32 0.0, %v1612
    %v1614 = vpop.f32.mrf.mxu0
    %v1615 = vpop.f32.mrf.mxu0
    %v1616 = vpop.f32.mrf.mxu0
    %1617 = vdwg.mxu0
    %v1619 = vsel %vm767, %v1294, 0
    %v1622 = vsel %vm1298, %v766, 0
    %1624 = vmatprep.subr.bf16.mxu0 0
    %1625 = vmatpush1.bf16.msra.mxu0 0
    %1626 = vmatprep.subr.bf16.mxu0 0
    %1627 = vmatpush1.bf16.msra.mxu0 0
    %1628 = vmatprep.subr.bf16.mxu0 0
    %1629 = vmatpush1.bf16.msra.mxu0 0
    %1630 = vmatprep.subr.bf16.mxu0 0
    %1631 = vmatpush1.bf16.msra.mxu0 0
    %1632 = vmatprep.subr.bf16.mxu0 0
    %1633 = vmatpush1.bf16.msra.mxu0 0
    %1634 = vmatprep.subr.bf16.mxu0 0
    %1635 = vmatpush1.bf16.msra.mxu0 0
    %1636 = vmatprep.subr.bf16.mxu0 0
    %1637 = vmatpush1.bf16.msra.mxu0 0
    %1638 = vmatprep.subr.bf16.mxu0 0
    %1639 = vmatpush1.bf16.msra.mxu0 %v1622
    %1640 = vmatprep.subr.bf16.mxu0 0
    %1641 = vmatpush2.bf16.msra.mxu0 0
    %1642 = vmatprep.subr.bf16.mxu0 0
    %1643 = vmatpush2.bf16.msra.mxu0 0
    %1644 = vmatprep.subr.bf16.mxu0 0
    %1645 = vmatpush2.bf16.msra.mxu0 0
    %1646 = vmatprep.subr.bf16.mxu0 0
    %1647 = vmatpush2.bf16.msra.mxu0 0
    %1648 = vmatprep.subr.bf16.mxu0 0
    %1649 = vmatpush2.bf16.msra.mxu0 0
    %1650 = vmatprep.subr.bf16.mxu0 0
    %1651 = vmatpush2.bf16.msra.mxu0 0
    %1652 = vmatprep.subr.bf16.mxu0 0
    %1653 = vmatpush2.bf16.msra.mxu0 0
    %1654 = vmatprep.subr.bf16.mxu0 0
    %1655 = vmatpush2.bf16.msra.mxu0 0
    %1656 = vmatprep.mubr.bf16.mxu0 0
    %1657 = vmatmul.mubr.bf16.gmra.mxu0 %v1619
    %v1658 = vpop.f32.mrf.mxu0
    %v1659 = vadd.f32 0.0, %v1658
    %v1660 = vpop.f32.mrf.mxu0
    %v1661 = vpop.f32.mrf.mxu0
    %v1662 = vpop.f32.mrf.mxu0
    %1663 = vdwg.mxu0
    %v1664 = vpack.c.bf16 %v1383, %v1337
    %v1665 = vpack.c.bf16 %v1475, %v1429
    %v1666 = vpack.c.bf16 %v1567, %v1521
    %v1667 = vpack.c.bf16 %v1659, %v1613
    %v1668 = vld [vmem:[%s8] sm:$0xf]
    %v1669 = vld [vmem:[%s8 + $0x4] sm:$0xf]
    %v1670 = vld [vmem:[%s8 + $0x8] sm:$0xf]
    %v1671 = vld [vmem:[%s8 + $0xc] sm:$0xf]
    %v1673 = vsel %vm767, %v1664, 0
    %v1676 = vsel %vm1298, %v1668, 0
    %1678 = vmatprep.subr.bf16.mxu0 0
    %1679 = vmatpush1.bf16.msra.mxu0 0
    %1680 = vmatprep.subr.bf16.mxu0 0
    %1681 = vmatpush1.bf16.msra.mxu0 0
    %1682 = vmatprep.subr.bf16.mxu0 0
    %1683 = vmatpush1.bf16.msra.mxu0 0
    %1684 = vmatprep.subr.bf16.mxu0 0
    %1685 = vmatpush1.bf16.msra.mxu0 0
    %1686 = vmatprep.subr.bf16.mxu0 0
    %1687 = vmatpush1.bf16.msra.mxu0 0
    %1688 = vmatprep.subr.bf16.mxu0 0
    %1689 = vmatpush1.bf16.msra.mxu0 0
    %1690 = vmatprep.subr.bf16.mxu0 0
    %1691 = vmatpush1.bf16.msra.mxu0 0
    %1692 = vmatprep.subr.bf16.mxu0 0
    %1693 = vmatpush1.bf16.msra.mxu0 %v1676
    %1694 = vmatprep.subr.bf16.mxu0 0
    %1695 = vmatpush2.bf16.msra.mxu0 0
    %1696 = vmatprep.subr.bf16.mxu0 0
    %1697 = vmatpush2.bf16.msra.mxu0 0
    %1698 = vmatprep.subr.bf16.mxu0 0
    %1699 = vmatpush2.bf16.msra.mxu0 0
    %1700 = vmatprep.subr.bf16.mxu0 0
    %1701 = vmatpush2.bf16.msra.mxu0 0
    %1702 = vmatprep.subr.bf16.mxu0 0
    %1703 = vmatpush2.bf16.msra.mxu0 0
    %1704 = vmatprep.subr.bf16.mxu0 0
    %1705 = vmatpush2.bf16.msra.mxu0 0
    %1706 = vmatprep.subr.bf16.mxu0 0
    %1707 = vmatpush2.bf16.msra.mxu0 0
    %1708 = vmatprep.subr.bf16.mxu0 0
    %1709 = vmatpush2.bf16.msra.mxu0 0
    %1710 = vmatprep.mubr.bf16.mxu0 0
    %1711 = vmatmul.mubr.bf16.gmra.mxu0 %v1673
    %v1712 = vpop.f32.mrf.mxu0
    %v1713 = vadd.f32 0.0, %v1712
    %v1714 = vpop.f32.mrf.mxu0
    %v1715 = vpop.f32.mrf.mxu0
    %v1716 = vadd.f32 0.0, %v1715
    %v1717 = vpop.f32.mrf.mxu0
    %1718 = vdwg.mxu0
    %v1720 = vsel %vm767, %v1665, 0
    %v1723 = vsel %vm1298, %v1669, 0
    %1725 = vmatprep.subr.bf16.mxu0 0
    %1726 = vmatpush1.bf16.msra.mxu0 0
    %1727 = vmatprep.subr.bf16.mxu0 0
    %1728 = vmatpush1.bf16.msra.mxu0 0
    %1729 = vmatprep.subr.bf16.mxu0 0
    %1730 = vmatpush1.bf16.msra.mxu0 0
    %1731 = vmatprep.subr.bf16.mxu0 0
    %1732 = vmatpush1.bf16.msra.mxu0 0
    %1733 = vmatprep.subr.bf16.mxu0 0
    %1734 = vmatpush1.bf16.msra.mxu0 0
    %1735 = vmatprep.subr.bf16.mxu0 0
    %1736 = vmatpush1.bf16.msra.mxu0 0
    %1737 = vmatprep.subr.bf16.mxu0 0
    %1738 = vmatpush1.bf16.msra.mxu0 0
    %1739 = vmatprep.subr.bf16.mxu0 0
    %1740 = vmatpush1.bf16.msra.mxu0 %v1723
    %1741 = vmatprep.subr.bf16.mxu0 0
    %1742 = vmatpush2.bf16.msra.mxu0 0
    %1743 = vmatprep.subr.bf16.mxu0 0
    %1744 = vmatpush2.bf16.msra.mxu0 0
    %1745 = vmatprep.subr.bf16.mxu0 0
    %1746 = vmatpush2.bf16.msra.mxu0 0
    %1747 = vmatprep.subr.bf16.mxu0 0
    %1748 = vmatpush2.bf16.msra.mxu0 0
    %1749 = vmatprep.subr.bf16.mxu0 0
    %1750 = vmatpush2.bf16.msra.mxu0 0
    %1751 = vmatprep.subr.bf16.mxu0 0
    %1752 = vmatpush2.bf16.msra.mxu0 0
    %1753 = vmatprep.subr.bf16.mxu0 0
    %1754 = vmatpush2.bf16.msra.mxu0 0
    %1755 = vmatprep.subr.bf16.mxu0 0
    %1756 = vmatpush2.bf16.msra.mxu0 0
    %1757 = vmatprep.mubr.bf16.mxu0 0
    %1758 = vmatmul.mubr.bf16.gmra.mxu0 %v1720
    %v1759 = vpop.f32.mrf.mxu0
    %v1760 = vadd.f32 0.0, %v1759
    %v1761 = vpop.f32.mrf.mxu0
    %v1762 = vpop.f32.mrf.mxu0
    %v1763 = vadd.f32 0.0, %v1762
    %v1764 = vpop.f32.mrf.mxu0
    %1765 = vdwg.mxu0
    %v1767 = vsel %vm767, %v1666, 0
    %v1770 = vsel %vm1298, %v1670, 0
    %1772 = vmatprep.subr.bf16.mxu0 0
    %1773 = vmatpush1.bf16.msra.mxu0 0
    %1774 = vmatprep.subr.bf16.mxu0 0
    %1775 = vmatpush1.bf16.msra.mxu0 0
    %1776 = vmatprep.subr.bf16.mxu0 0
    %1777 = vmatpush1.bf16.msra.mxu0 0
    %1778 = vmatprep.subr.bf16.mxu0 0
    %1779 = vmatpush1.bf16.msra.mxu0 0
    %1780 = vmatprep.subr.bf16.mxu0 0
    %1781 = vmatpush1.bf16.msra.mxu0 0
    %1782 = vmatprep.subr.bf16.mxu0 0
    %1783 = vmatpush1.bf16.msra.mxu0 0
    %1784 = vmatprep.subr.bf16.mxu0 0
    %1785 = vmatpush1.bf16.msra.mxu0 0
    %1786 = vmatprep.subr.bf16.mxu0 0
    %1787 = vmatpush1.bf16.msra.mxu0 %v1770
    %1788 = vmatprep.subr.bf16.mxu0 0
    %1789 = vmatpush2.bf16.msra.mxu0 0
    %1790 = vmatprep.subr.bf16.mxu0 0
    %1791 = vmatpush2.bf16.msra.mxu0 0
    %1792 = vmatprep.subr.bf16.mxu0 0
    %1793 = vmatpush2.bf16.msra.mxu0 0
    %1794 = vmatprep.subr.bf16.mxu0 0
    %1795 = vmatpush2.bf16.msra.mxu0 0
    %1796 = vmatprep.subr.bf16.mxu0 0
    %1797 = vmatpush2.bf16.msra.mxu0 0
    %1798 = vmatprep.subr.bf16.mxu0 0
    %1799 = vmatpush2.bf16.msra.mxu0 0
    %1800 = vmatprep.subr.bf16.mxu0 0
    %1801 = vmatpush2.bf16.msra.mxu0 0
    %1802 = vmatprep.subr.bf16.mxu0 0
    %1803 = vmatpush2.bf16.msra.mxu0 0
    %1804 = vmatprep.mubr.bf16.mxu0 0
    %1805 = vmatmul.mubr.bf16.gmra.mxu0 %v1767
    %v1806 = vpop.f32.mrf.mxu0
    %v1807 = vadd.f32 0.0, %v1806
    %v1808 = vpop.f32.mrf.mxu0
    %v1809 = vpop.f32.mrf.mxu0
    %v1810 = vadd.f32 0.0, %v1809
    %v1811 = vpop.f32.mrf.mxu0
    %1812 = vdwg.mxu0
    %v1814 = vsel %vm767, %v1667, 0
    %v1817 = vsel %vm1298, %v1671, 0
    %1819 = vmatprep.subr.bf16.mxu0 0
    %1820 = vmatpush1.bf16.msra.mxu0 0
    %1821 = vmatprep.subr.bf16.mxu0 0
    %1822 = vmatpush1.bf16.msra.mxu0 0
    %1823 = vmatprep.subr.bf16.mxu0 0
    %1824 = vmatpush1.bf16.msra.mxu0 0
    %1825 = vmatprep.subr.bf16.mxu0 0
    %1826 = vmatpush1.bf16.msra.mxu0 0
    %1827 = vmatprep.subr.bf16.mxu0 0
    %1828 = vmatpush1.bf16.msra.mxu0 0
    %1829 = vmatprep.subr.bf16.mxu0 0
    %1830 = vmatpush1.bf16.msra.mxu0 0
    %1831 = vmatprep.subr.bf16.mxu0 0
    %1832 = vmatpush1.bf16.msra.mxu0 0
    %1833 = vmatprep.subr.bf16.mxu0 0
    %1834 = vmatpush1.bf16.msra.mxu0 %v1817
    %1835 = vmatprep.subr.bf16.mxu0 0
    %1836 = vmatpush2.bf16.msra.mxu0 0
    %1837 = vmatprep.subr.bf16.mxu0 0
    %1838 = vmatpush2.bf16.msra.mxu0 0
    %1839 = vmatprep.subr.bf16.mxu0 0
    %1840 = vmatpush2.bf16.msra.mxu0 0
    %1841 = vmatprep.subr.bf16.mxu0 0
    %1842 = vmatpush2.bf16.msra.mxu0 0
    %1843 = vmatprep.subr.bf16.mxu0 0
    %1844 = vmatpush2.bf16.msra.mxu0 0
    %1845 = vmatprep.subr.bf16.mxu0 0
    %1846 = vmatpush2.bf16.msra.mxu0 0
    %1847 = vmatprep.subr.bf16.mxu0 0
    %1848 = vmatpush2.bf16.msra.mxu0 0
    %1849 = vmatprep.subr.bf16.mxu0 0
    %1850 = vmatpush2.bf16.msra.mxu0 0
    %1851 = vmatprep.mubr.bf16.mxu0 0
    %1852 = vmatmul.mubr.bf16.gmra.mxu0 %v1814
    %v1853 = vpop.f32.mrf.mxu0
    %v1854 = vadd.f32 0.0, %v1853
    %v1855 = vpop.f32.mrf.mxu0
    %v1856 = vpop.f32.mrf.mxu0
    %v1857 = vadd.f32 0.0, %v1856
    %v1858 = vpop.f32.mrf.mxu0
    %1859 = vdwg.mxu0
    %v1860 = vsel %vm77, %v1713, 0.0
    %v1861 = vsel %vm77, %v1760, 0.0
    %v1862 = vadd.f32 %v1860, %v1861
    %v1863 = vsel %vm77, %v1807, 0.0
    %v1864 = vadd.f32 %v1862, %v1863
    %v1865 = vsel %vm77, %v1854, 0.0
    %v1866 = vadd.f32 %v1864, %v1865
    %v1867 = vsel %vm77, %v1716, 0.0
    %v1868 = vsel %vm77, %v1763, 0.0
    %v1869 = vadd.f32 %v1867, %v1868
    %v1870 = vsel %vm77, %v1810, 0.0
    %v1871 = vadd.f32 %v1869, %v1870
    %v1872 = vsel %vm77, %v1857, 0.0
    %v1873 = vadd.f32 %v1871, %v1872
    %v1874 = vsel %vm77, %v1866, 0.0
    %1875 = vadd.xlane.f32.xlu0 %v1874
    %v1876 = vpop.xlane.xlu0 %1875
    %v1877 = vsel %vm77, %v1873, 0.0
    %1878 = vadd.xlane.f32.xlu0 %v1877
    %v1879 = vpop.xlane.xlu0 %1878
    %v1880 = vrcp.pop 32.0
    %v1881 = vmul.f32 %v1876, %v1880
    %v1882 = vmul.f32 %v1879, %v1880
    %v1883 = vsub.f32 %v1866, %v1881
    %v1884 = vsub.f32 %v1873, %v1882
    %v1885 = vmul.f32 %v1883, %v1883
    %v1886 = vmul.f32 %v1884, %v1884
    %v1887 = vsel %vm77, %v1885, 0.0
    %1888 = vadd.xlane.f32.xlu0 %v1887
    %v1889 = vpop.xlane.xlu0 %1888
    %v1890 = vsel %vm77, %v1886, 0.0
    %1891 = vadd.xlane.f32.xlu0 %v1890
    %v1892 = vpop.xlane.xlu0 %1891
    %v1893 = vmul.f32 %v1889, %v1880
    %v1894 = vmul.f32 %v1892, %v1880
    %v1895 = vadd.f32 %v1893, 1e-05
    %v1896 = vadd.f32 %v1894, 1e-05
    %v1897 = vrsqrt.pop %v1895
    %v1898 = vrsqrt.pop %v1896
    %v1899 = vmul.f32 %v1883, %v1897
    %v1900 = vmul.f32 %v1884, %v1898
    %v1901 = vld [vmem:[%s9] sm:$0x1]
    %v1903 = vlaneseq
    %v1904 = vshrl.u32 %v1903, 7
    %v1905 = vsub.s32 0, %v1904
    %v1906 = vrot.slane %v1901, %v1905
    %v1908 = vmul.f32 %v1899, %v1906
    %v1909 = vmul.f32 %v1900, %v1906
    %v1910 = vld [vmem:[%s10] sm:$0x1]
    %v1912 = vlaneseq
    %v1913 = vshrl.u32 %v1912, 7
    %v1914 = vsub.s32 0, %v1913
    %v1915 = vrot.slane %v1910, %v1914
    %v1917 = vadd.f32 %v1908, %v1915
    %v1918 = vadd.f32 %v1909, %v1915
    %1919 = vst.msk [vmem:[#allocation2] sm:$0xff] %vm77, %v1917
    %1920 = vst.msk [vmem:[#allocation2 + $0x8] sm:$0xff] %vm77, %v1918
    // Predicated region
    $region46: #{tpu_custom_call.1} parent=1 // pred_check
      _
    $region47: #{tpu_custom_call.1} parent=1 // pred_check_branch
      %1922 = sbr.rel (0) target = $region49
    $region48: #{tpu_custom_call.1} parent=1 // pred_region
      %s1924 = ssub.s32 256, 256
      %1925 = vsyncadd [#allocation3], %s1924
      %s1926 = sshll.u32 [#allocation2], 4
      %s1927 = int_to_ptr.vmem [resolvable:$true] %s1926
      %1932 = dma.vmem_to_hbm [thread:$0]  %s1927, 256, %s11, [#allocation3], 128, 128, 8
    $region49: #{tpu_custom_call.1} parent=1 // pred_fallthru
      _
    // Predicated region
    $region50: #{tpu_custom_call.1} parent=1 // pred_check
      _
    $region51: #{tpu_custom_call.1} parent=1 // pred_check_branch
      %1934 = sbr.rel (0) target = $region53
    $region52: #{tpu_custom_call.1} parent=1 // pred_region
      %1935 = dma.done [#allocation3], 256
    $region53: #{tpu_custom_call.1} parent=1 // pred_fallthru
      _
    %1936 = vsyncpa [#allocation3], 1

</llo_original>
